<compile_context>
chip_gen: v6e
topology: v6e:2x2x1
jax: 0.10.0
libtpu: 0.0.40
codegen_flags: <defaults>
</compile_context>

<pallas_src>
import math
import numpy as np
import jax
import jax.numpy as jnp
from jax.experimental import pallas as pl
from jax.experimental.pallas import tpu as pltpu

LN_EPS = 1e-5          # torch.nn.LayerNorm default
NEG_MASK = -1e9        # cross-code attention mask
ROWS_PER_LAYER = 6     # bqkv, bo, ln_g, ln_b, bf1, bf2


# --------------------------------------------------------------------------
# Fused kernel: n_layers HCL layers over the block-diag batched graph +
# pooling + classifier head + sigmoid
# --------------------------------------------------------------------------
def make_clo_kernel(n_layers, d_k, F, H, head_h, n_class, G, mxu_dtype):
    qkv_w = 2 * d_k + F          # folded QKV width (V carries W_O -> width F)
    layer_w = qkv_w + H          # per-layer chunk width inside the wF slab

    def mm(x, w):
        # bf16 (or f32) MXU operands, f32 accumulation.
        return jnp.dot(x.astype(mxu_dtype), w.astype(mxu_dtype),
                       preferred_element_type=jnp.float32)

    def layernorm(h, g, b):
        mu = jnp.mean(h, axis=-1, keepdims=True)
        ms = jnp.mean(h * h, axis=-1, keepdims=True)       # independent reductions
        return (h - mu) * jax.lax.rsqrt(ms - mu * mu + LN_EPS) * g + b

    def kernel(a_ref, x_ref, p_ref, mask_ref, wF_ref, wH_ref, w2_ref, b_ref,
               out_ref):
        a = a_ref[...].astype(mxu_dtype)      # reused by every GraphConv
        mask = mask_ref[...]                  # 0 within a code, -1e9 across codes
        emb = x_ref[...]
        attn_bias = mask                      # layer 0: h_attn is None -> mask only

        for l in range(n_layers):             # lazy, point-of-use weight loads
            base = l * layer_w
            wqkv = wF_ref[:, base:base + qkv_w]
            wf1 = wF_ref[:, base + qkv_w:base + layer_w]
            wf2 = wH_ref[l * H:(l + 1) * H, :]
            r = l * ROWS_PER_LAYER
            bqkv = b_ref[r + 0:r + 1, :][:, :qkv_w]
            bo = b_ref[r + 1:r + 2, :][:, :F]
            ln_g = b_ref[r + 2:r + 3, :][:, :F]
            ln_b = b_ref[r + 3:r + 4, :][:, :F]
            bf1 = b_ref[r + 4:r + 5, :][:, :H]
            bf2 = b_ref[r + 5:r + 6, :][:, :F]

            # --- Self_Attention: shared aggregation + one wide QKV matmul ---
            ax = mm(a, emb)                            # [NT, F]
            qkv = mm(ax, wqkv) + bqkv                  # [NT, 2dk + F]
            q = qkv[:, :d_k]                           # 1/sqrt(d_k) folded in
            k = qkv[:, d_k:2 * d_k]
            v = qkv[:, 2 * d_k:]                       # W_O folded in -> width F

            scores = jax.lax.dot_general(
                q.astype(mxu_dtype), k.astype(mxu_dtype),
                (((1,), (1,)), ((), ())),
                preferred_element_type=jnp.float32) + attn_bias
            m = jnp.max(scores, axis=-1, keepdims=True)
            e = jnp.exp(scores - m)
            attn = e / jnp.sum(e, axis=-1, keepdims=True)   # exact reciprocal
            attn_bias = attn + mask                         # bias for next layer

            attn_o = mm(a, mm(attn, v)) + bo                # W_O already folded
            attn_o = layernorm(attn_o, ln_g, ln_b)

            # --- GCNFeedforwardLayer (dropout = identity in eval mode) ---
            ff_in = attn_o + emb
            h1 = jnp.maximum(mm(mm(a, ff_in), wf1) + bf1, 0.0)
            h2 = mm(mm(a, h1), wf2) + bf2
            emb = layernorm(h2, ln_g, ln_b)

        # pooling (segment-sum matmul), |ast1 - ast2|, classifier MLP, sigmoid
        ast = mm(p_ref[...], emb)                           # [2G, F]
        d = jnp.abs(ast[:G, :] - ast[G:, :])                # [G, F]
        base = n_layers * layer_w
        w1 = wF_ref[:, base:base + head_h]
        rb = n_layers * ROWS_PER_LAYER
        b1 = b_ref[rb:rb + 1, :][:, :head_h]
        b2 = b_ref[rb + 1:rb + 2, :][:, :n_class]
        h = jnp.maximum(mm(d, w1) + b1, 0.0)
        logits = mm(h, w2_ref[...]) + b2
        out_ref[...] = jax.nn.sigmoid(logits)

    return kernel


# --------------------------------------------------------------------------
# Wrapper: weight folding + operand packing + block-diag batching + one call
# --------------------------------------------------------------------------
def _pad_row(b, width):
    b = jnp.asarray(b, jnp.float32).reshape(1, -1)
    return jnp.pad(b, ((0, 0), (0, width - b.shape[1])))


def clo_model_forward(params, A1, X1, P1, A2, X2, P2,
                      mxu_dtype=jnp.bfloat16):
    layers = params['layers']
    n_layers = len(layers)
    F = X1.shape[1]
    d_k = layers[0]['wq'].shape[1]
    H = layers[0]['wf1'].shape[1]
    cp = params['cla']
    head_h = cp['w1'].shape[1]
    n_class = cp['w2'].shape[1]
    G = P1.shape[0]
    assert P2.shape[0] == G, "both code batches must have the same graph count"
    N1, N2 = X1.shape[0], X2.shape[0]
    NT = N1 + N2

    scale = 1.0 / math.sqrt(float(d_k))
    qkv_w = 2 * d_k + F
    bias_w = max(qkv_w, F, H, head_h, n_class)

    # ---- fold scale into Wq/bq, W_O into Wv/bv; pack weights into 4 slabs ----
    wF_parts, bias_rows = [], []
    for lp in layers:
        wv_o = lp['wv'] @ lp['wo']                       # (F, F)
        bv_o = lp['bv'] @ lp['wo']                       # (1, F)
        wF_parts.append(jnp.concatenate(
            [lp['wq'] * scale, lp['wk'], wv_o, lp['wf1']], axis=1))
        bqkv = jnp.concatenate([lp['bq'] * scale, lp['bk'], bv_o], axis=1)
        for row in (bqkv, lp['bo'], lp['ln_g'], lp['ln_b'], lp['bf1'], lp['bf2']):
            bias_rows.append(_pad_row(row, bias_w))
    wF_parts.append(cp['w1'])                            # head W1 shares F rows
    bias_rows += [_pad_row(cp['b1'], bias_w), _pad_row(cp['b2'], bias_w)]

    wF = jnp.concatenate(wF_parts, axis=1)               # (F, n_layers*layer_w + head_h)
    wH = jnp.concatenate([lp['wf2'] for lp in layers], axis=0)   # (n_layers*H, F)
    w2 = jnp.asarray(cp['w2'], jnp.float32)              # (head_h, n_class)
    biases = jnp.concatenate(bias_rows, axis=0)          # (6*n_layers+2, bias_w)

    # ---- block-diagonal batching of the two code graphs ----
    A_bd = jnp.zeros((NT, NT), jnp.float32)
    A_bd = A_bd.at[:N1, :N1].set(A1).at[N1:, N1:].set(A2)
    X_cat = jnp.concatenate([X1, X2], axis=0).astype(jnp.float32)
    P_cat = jnp.zeros((2 * G, NT), jnp.float32)
    P_cat = P_cat.at[:G, :N1].set(P1).at[G:, N1:].set(P2)
    seg = jnp.concatenate([jnp.zeros((N1,), jnp.int32),
                           jnp.ones((N2,), jnp.int32)])
    mask = jnp.where(seg[:, None] == seg[None, :], 0.0, NEG_MASK)
    mask = mask.astype(jnp.float32)

    kern = make_clo_kernel(n_layers, d_k, F, H, head_h, n_class, G, mxu_dtype)
    vmem = pl.BlockSpec(memory_space=pltpu.MemorySpace.VMEM)
    args = (A_bd, X_cat, P_cat, mask, wF, wH, w2, biases)
    return pl.pallas_call(
        kern,
        out_shape=jax.ShapeDtypeStruct((G, n_class), jnp.float32),
        in_specs=[vmem] * len(args),
        out_specs=vmem,
        compiler_params=pltpu.CompilerParams(vmem_limit_bytes=64 * 1024 * 1024),
    )(*args)


# --------------------------------------------------------------------------
# Pure-JAX reference (mirrors the PyTorch wiring, unfolded weights)
# --------------------------------------------------------------------------
def clo_model_reference(params, A1, X1, P1, A2, X2, P2):
    def gcn(A, X, W, b):
        return A @ (X @ W) + b

    def layernorm(h, g, b):
        mu = h.mean(-1, keepdims=True)
        var = ((h - mu) ** 2).mean(-1, keepdims=True)
        return (h - mu) / jnp.sqrt(var + LN_EPS) * g + b

    def run(A, X):
        emb, attn = X, None
        for lp in params['layers']:
            Q = gcn(A, emb, lp['wq'], lp['bq'])
            K = gcn(A, emb, lp['wk'], lp['bk'])
            V = gcn(A, emb, lp['wv'], lp['bv'])
            scores = (Q @ K.T) / jnp.sqrt(jnp.float32(lp['wq'].shape[1]))
            if attn is not None:
                scores = scores + attn
            attn = jax.nn.softmax(scores, axis=-1)
            attn_out = gcn(A, attn @ V, lp['wo'], lp['bo'])
            attn_out = layernorm(attn_out, lp['ln_g'], lp['ln_b'])
            ff = attn_out + emb
            h1 = jax.nn.relu(gcn(A, ff, lp['wf1'], lp['bf1']))
            h2 = gcn(A, h1, lp['wf2'], lp['bf2'])
            emb = layernorm(h2, lp['ln_g'], lp['ln_b'])
        return emb

    e1, e2 = run(A1, X1), run(A2, X2)
    ast1, ast2 = P1 @ e1, P2 @ e2
    d = jnp.abs(ast1 - ast2)
    cp = params['cla']
    h = jax.nn.relu(d @ cp['w1'] + cp['b1'])
    return jax.nn.sigmoid(h @ cp['w2'] + cp['b2'])


# --------------------------------------------------------------------------
# Deterministic setup helpers
# --------------------------------------------------------------------------
def make_norm_adj(key, N):
    a = (jax.random.uniform(key, (N, N)) < 0.3).astype(jnp.float32)
    a = jnp.maximum(a, a.T)
    a = jnp.minimum(a + jnp.eye(N, dtype=jnp.float32), 1.0)   # self loops
    dinv = 1.0 / jnp.sqrt(jnp.sum(a, axis=1))
    return a * dinv[:, None] * dinv[None, :]


def make_pool_matrix(node_num, N):
    G = len(node_num)
    P = np.zeros((G, N), np.float32)
    start = 0
    for g, n in enumerate(node_num):
        P[g, start:start + n] = 1.0
        start += n
    return jnp.asarray(P)


def init_layer_params(key, F, dk, dv, H):
    ks = jax.random.split(key, 12)

    def w(k, shape):
        return (jax.random.normal(k, shape) * 0.1).astype(jnp.float32)

    return dict(
        wq=w(ks[0], (F, dk)), bq=w(ks[1], (1, dk)),
        wk=w(ks[2], (F, dk)), bk=w(ks[3], (1, dk)),
        wv=w(ks[4], (F, dv)), bv=w(ks[5], (1, dv)),
        wo=w(ks[6], (dv, F)), bo=w(ks[7], (1, F)),
        ln_g=jnp.ones((1, F), jnp.float32), ln_b=jnp.zeros((1, F), jnp.float32),
        wf1=w(ks[8], (F, H)), bf1=w(ks[9], (1, H)),
        wf2=w(ks[10], (H, F)), bf2=w(ks[11], (1, F)),
    )


def init_cla_params(key, F, n_class):
    ks = jax.random.split(key, 4)

    def w(k, shape):
        return (jax.random.normal(k, shape) * 0.1).astype(jnp.float32)

    return dict(w1=w(ks[0], (F, 128)), b1=w(ks[1], (1, 128)),
                w2=w(ks[2], (128, n_class)), b2=w(ks[3], (1, n_class)))


if __name__ == "__main__":
    key = jax.random.PRNGKey(0)
    in_feature, d_k, d_v, hidden_size = 32, 32, 32, 32
    n_layers, n_class = 2, 4
    N1, N2 = 16, 16
    node_num1 = [7, 9]     # two graphs in code-1 batch
    node_num2 = [6, 10]    # two graphs in code-2 batch

    keys = jax.random.split(key, 6 + n_layers)
    A1 = make_norm_adj(keys[0], N1)
    A2 = make_norm_adj(keys[1], N2)
    X1 = jax.random.normal(keys[2], (N1, in_feature), jnp.float32)
    X2 = jax.random.normal(keys[3], (N2, in_feature), jnp.float32)
    P1 = make_pool_matrix(node_num1, N1)
    P2 = make_pool_matrix(node_num2, N2)

    params = dict(
        layers=[init_layer_params(keys[6 + i], in_feature, d_k, d_v, hidden_size)
                for i in range(n_layers)],
        cla=init_cla_params(keys[4], in_feature, n_class),
    )

    # accurate f32 reference
    with jax.default_matmul_precision("float32"):
        ref = clo_model_reference(params, A1, X1, P1, A2, X2, P2)

    # kernel: f32 MXU variant (tight check) and bf16 MXU variant (fast path)
    out_f32 = clo_model_forward(params, A1, X1, P1, A2, X2, P2,
                                mxu_dtype=jnp.float32)
    out_bf16 = clo_model_forward(params, A1, X1, P1, A2, X2, P2,
                                 mxu_dtype=jnp.bfloat16)
    jax.block_until_ready((ref, out_f32, out_bf16))

    G = len(node_num1)
    for out in (out_f32, out_bf16):
        assert out.shape == (G, n_class)
        assert bool(jnp.all(jnp.isfinite(out)))
        assert bool(jnp.all((out >= 0.0) & (out <= 1.0)))
    assert float(jnp.max(jnp.abs(out_f32 - ref))) < 2e-2
    assert float(jnp.max(jnp.abs(out_bf16 - ref))) < 1e-1
    print("KERNEL_OK")
</pallas_src>

<mosaic_0001>
module attributes {stable_mosaic.version = 11 : i64} {
  func.func @kernel(%arg0: memref<32x32xf32, #tpu.memory_space<vmem>>, %arg1: memref<32x32xf32, #tpu.memory_space<vmem>>, %arg2: memref<4x32xf32, #tpu.memory_space<vmem>>, %arg3: memref<32x32xf32, #tpu.memory_space<vmem>>, %arg4: memref<32x384xf32, #tpu.memory_space<vmem>>, %arg5: memref<64x32xf32, #tpu.memory_space<vmem>>, %arg6: memref<128x4xf32, #tpu.memory_space<vmem>>, %arg7: memref<14x128xf32, #tpu.memory_space<vmem>>, %arg8: memref<2x4xf32, #tpu.memory_space<vmem>>) attributes {dimension_semantics = [], scalar_prefetch = 0 : i64, scratch_operands = 0 : i64, tpu.core_type = #tpu.core_type<tc>} {
    %c0 = arith.constant 0 : index
    %c0_0 = arith.constant 0 : index
    %0 = vector.load %arg0[%c0, %c0_0] : memref<32x32xf32, #tpu.memory_space<vmem>>, vector<32x32xf32>
    %c0_1 = arith.constant 0 : index
    %c0_2 = arith.constant 0 : index
    %1 = vector.load %arg3[%c0_1, %c0_2] : memref<32x32xf32, #tpu.memory_space<vmem>>, vector<32x32xf32>
    %c0_3 = arith.constant 0 : index
    %c0_4 = arith.constant 0 : index
    %2 = vector.load %arg1[%c0_3, %c0_4] : memref<32x32xf32, #tpu.memory_space<vmem>>, vector<32x32xf32>
    %c0_5 = arith.constant 0 : index
    %c0_6 = arith.constant 0 : index
    %3 = vector.load %arg4[%c0_5, %c0_6] : memref<32x384xf32, #tpu.memory_space<vmem>>, vector<32x96xf32>
    %c0_7 = arith.constant 0 : index
    %c96 = arith.constant 96 : index
    %4 = vector.load %arg4[%c0_7, %c96] : memref<32x384xf32, #tpu.memory_space<vmem>>, vector<32x32xf32>
    %c0_8 = arith.constant 0 : index
    %c0_9 = arith.constant 0 : index
    %5 = vector.load %arg5[%c0_8, %c0_9] : memref<64x32xf32, #tpu.memory_space<vmem>>, vector<32x32xf32>
    %c0_10 = arith.constant 0 : index
    %c0_11 = arith.constant 0 : index
    %6 = vector.load %arg7[%c0_10, %c0_11] : memref<14x128xf32, #tpu.memory_space<vmem>>, vector<1x128xf32>
    %7 = vector.extract_strided_slice %6 {offsets = [0, 0], sizes = [1, 96], strides = [1, 1]} : vector<1x128xf32> to vector<1x96xf32>
    %c1 = arith.constant 1 : index
    %c0_12 = arith.constant 0 : index
    %8 = vector.load %arg7[%c1, %c0_12] : memref<14x128xf32, #tpu.memory_space<vmem>>, vector<1x128xf32>
    %9 = vector.extract_strided_slice %8 {offsets = [0, 0], sizes = [1, 32], strides = [1, 1]} : vector<1x128xf32> to vector<1x32xf32>
    %c2 = arith.constant 2 : index
    %c0_13 = arith.constant 0 : index
    %10 = vector.load %arg7[%c2, %c0_13] : memref<14x128xf32, #tpu.memory_space<vmem>>, vector<1x128xf32>
    %11 = vector.extract_strided_slice %10 {offsets = [0, 0], sizes = [1, 32], strides = [1, 1]} : vector<1x128xf32> to vector<1x32xf32>
    %c3 = arith.constant 3 : index
    %c0_14 = arith.constant 0 : index
    %12 = vector.load %arg7[%c3, %c0_14] : memref<14x128xf32, #tpu.memory_space<vmem>>, vector<1x128xf32>
    %13 = vector.extract_strided_slice %12 {offsets = [0, 0], sizes = [1, 32], strides = [1, 1]} : vector<1x128xf32> to vector<1x32xf32>
    %c4 = arith.constant 4 : index
    %c0_15 = arith.constant 0 : index
    %14 = vector.load %arg7[%c4, %c0_15] : memref<14x128xf32, #tpu.memory_space<vmem>>, vector<1x128xf32>
    %15 = vector.extract_strided_slice %14 {offsets = [0, 0], sizes = [1, 32], strides = [1, 1]} : vector<1x128xf32> to vector<1x32xf32>
    %c5 = arith.constant 5 : index
    %c0_16 = arith.constant 0 : index
    %16 = vector.load %arg7[%c5, %c0_16] : memref<14x128xf32, #tpu.memory_space<vmem>>, vector<1x128xf32>
    %17 = vector.extract_strided_slice %16 {offsets = [0, 0], sizes = [1, 32], strides = [1, 1]} : vector<1x128xf32> to vector<1x32xf32>
    %cst = arith.constant dense<0.000000e+00> : vector<32x32xf32>
    %18 = tpu.matmul %0, %2, %cst {dimension_numbers = #tpu.dot_dimension_numbers<[1], [0], [0], [1], [0, 0, 1, 1], [], []>} : vector<32x32xf32>, vector<32x32xf32>, vector<32x32xf32> -> vector<32x32xf32>
    %cst_17 = arith.constant dense<0.000000e+00> : vector<32x96xf32>
    %19 = tpu.matmul %18, %3, %cst_17 {dimension_numbers = #tpu.dot_dimension_numbers<[1], [0], [0], [1], [0, 0, 1, 1], [], []>} : vector<32x32xf32>, vector<32x96xf32>, vector<32x96xf32> -> vector<32x96xf32>
    %20 = vector.broadcast %7 : vector<1x96xf32> to vector<32x96xf32>
    %21 = arith.addf %19, %20 : vector<32x96xf32>
    %22 = vector.extract_strided_slice %21 {offsets = [0, 0], sizes = [32, 32], strides = [1, 1]} : vector<32x96xf32> to vector<32x32xf32>
    %23 = vector.extract_strided_slice %21 {offsets = [0, 32], sizes = [32, 32], strides = [1, 1]} : vector<32x96xf32> to vector<32x32xf32>
    %24 = vector.extract_strided_slice %21 {offsets = [0, 64], sizes = [32, 32], strides = [1, 1]} : vector<32x96xf32> to vector<32x32xf32>
    %cst_18 = arith.constant dense<0.000000e+00> : vector<32x32xf32>
    %25 = tpu.matmul %22, %23, %cst_18 {dimension_numbers = #tpu.dot_dimension_numbers<[1], [1], [0], [0], [0, 0, 1, 0], [], []>} : vector<32x32xf32>, vector<32x32xf32>, vector<32x32xf32> -> vector<32x32xf32>
    %26 = arith.addf %25, %1 : vector<32x32xf32>
    %cst_19 = arith.constant dense<0xFF800000> : vector<32xf32>
    %27 = vector.multi_reduction <maximumf>, %26, %cst_19 [1] : vector<32x32xf32> to vector<32xf32>
    %28 = vector.shape_cast %27 : vector<32xf32> to vector<32x1xf32>
    %29 = vector.broadcast %28 : vector<32x1xf32> to vector<32x32xf32>
    %30 = arith.subf %26, %29 : vector<32x32xf32>
    %31 = math.exp %30 : vector<32x32xf32>
    %cst_20 = arith.constant dense<0.000000e+00> : vector<32xf32>
    %32 = vector.multi_reduction <add>, %31, %cst_20 [1] : vector<32x32xf32> to vector<32xf32>
    %33 = vector.shape_cast %32 : vector<32xf32> to vector<32x1xf32>
    %34 = vector.broadcast %33 : vector<32x1xf32> to vector<32x32xf32>
    %35 = arith.divf %31, %34 : vector<32x32xf32>
    %36 = arith.addf %35, %1 : vector<32x32xf32>
    %cst_21 = arith.constant dense<0.000000e+00> : vector<32x32xf32>
    %37 = tpu.matmul %35, %24, %cst_21 {dimension_numbers = #tpu.dot_dimension_numbers<[1], [0], [0], [1], [0, 0, 1, 1], [], []>} : vector<32x32xf32>, vector<32x32xf32>, vector<32x32xf32> -> vector<32x32xf32>
    %cst_22 = arith.constant dense<0.000000e+00> : vector<32x32xf32>
    %38 = tpu.matmul %0, %37, %cst_22 {dimension_numbers = #tpu.dot_dimension_numbers<[1], [0], [0], [1], [0, 0, 1, 1], [], []>} : vector<32x32xf32>, vector<32x32xf32>, vector<32x32xf32> -> vector<32x32xf32>
    %39 = vector.broadcast %9 : vector<1x32xf32> to vector<32x32xf32>
    %40 = arith.addf %38, %39 : vector<32x32xf32>
    %cst_23 = arith.constant dense<0.000000e+00> : vector<32xf32>
    %41 = vector.multi_reduction <add>, %40, %cst_23 [1] : vector<32x32xf32> to vector<32xf32>
    %42 = vector.shape_cast %41 : vector<32xf32> to vector<32x1xf32>
    %cst_24 = arith.constant 3.200000e+01 : f32
    %43 = vector.broadcast %cst_24 : f32 to vector<32x1xf32>
    %44 = arith.divf %42, %43 : vector<32x1xf32>
    %45 = arith.mulf %40, %40 : vector<32x32xf32>
    %cst_25 = arith.constant dense<0.000000e+00> : vector<32xf32>
    %46 = vector.multi_reduction <add>, %45, %cst_25 [1] : vector<32x32xf32> to vector<32xf32>
    %47 = vector.shape_cast %46 : vector<32xf32> to vector<32x1xf32>
    %cst_26 = arith.constant 3.200000e+01 : f32
    %48 = vector.broadcast %cst_26 : f32 to vector<32x1xf32>
    %49 = arith.divf %47, %48 : vector<32x1xf32>
    %50 = vector.broadcast %44 : vector<32x1xf32> to vector<32x32xf32>
    %51 = arith.subf %40, %50 : vector<32x32xf32>
    %52 = arith.mulf %44, %44 : vector<32x1xf32>
    %53 = arith.subf %49, %52 : vector<32x1xf32>
    %cst_27 = arith.constant 9.99999974E-6 : f32
    %54 = vector.broadcast %cst_27 : f32 to vector<32x1xf32>
    %55 = arith.addf %53, %54 : vector<32x1xf32>
    %56 = math.rsqrt %55 : vector<32x1xf32>
    %57 = vector.broadcast %56 : vector<32x1xf32> to vector<32x32xf32>
    %58 = arith.mulf %51, %57 : vector<32x32xf32>
    %59 = vector.broadcast %11 : vector<1x32xf32> to vector<32x32xf32>
    %60 = arith.mulf %58, %59 : vector<32x32xf32>
    %61 = vector.broadcast %13 : vector<1x32xf32> to vector<32x32xf32>
    %62 = arith.addf %60, %61 : vector<32x32xf32>
    %63 = arith.addf %62, %2 : vector<32x32xf32>
    %cst_28 = arith.constant dense<0.000000e+00> : vector<32x32xf32>
    %64 = tpu.matmul %0, %63, %cst_28 {dimension_numbers = #tpu.dot_dimension_numbers<[1], [0], [0], [1], [0, 0, 1, 1], [], []>} : vector<32x32xf32>, vector<32x32xf32>, vector<32x32xf32> -> vector<32x32xf32>
    %cst_29 = arith.constant dense<0.000000e+00> : vector<32x32xf32>
    %65 = tpu.matmul %64, %4, %cst_29 {dimension_numbers = #tpu.dot_dimension_numbers<[1], [0], [0], [1], [0, 0, 1, 1], [], []>} : vector<32x32xf32>, vector<32x32xf32>, vector<32x32xf32> -> vector<32x32xf32>
    %66 = vector.broadcast %15 : vector<1x32xf32> to vector<32x32xf32>
    %67 = arith.addf %65, %66 : vector<32x32xf32>
    %cst_30 = arith.constant 0.000000e+00 : f32
    %68 = vector.broadcast %cst_30 : f32 to vector<32x32xf32>
    %69 = arith.maximumf %67, %68 : vector<32x32xf32>
    %cst_31 = arith.constant dense<0.000000e+00> : vector<32x32xf32>
    %70 = tpu.matmul %0, %69, %cst_31 {dimension_numbers = #tpu.dot_dimension_numbers<[1], [0], [0], [1], [0, 0, 1, 1], [], []>} : vector<32x32xf32>, vector<32x32xf32>, vector<32x32xf32> -> vector<32x32xf32>
    %cst_32 = arith.constant dense<0.000000e+00> : vector<32x32xf32>
    %71 = tpu.matmul %70, %5, %cst_32 {dimension_numbers = #tpu.dot_dimension_numbers<[1], [0], [0], [1], [0, 0, 1, 1], [], []>} : vector<32x32xf32>, vector<32x32xf32>, vector<32x32xf32> -> vector<32x32xf32>
    %72 = vector.broadcast %17 : vector<1x32xf32> to vector<32x32xf32>
    %73 = arith.addf %71, %72 : vector<32x32xf32>
    %cst_33 = arith.constant dense<0.000000e+00> : vector<32xf32>
    %74 = vector.multi_reduction <add>, %73, %cst_33 [1] : vector<32x32xf32> to vector<32xf32>
    %75 = vector.shape_cast %74 : vector<32xf32> to vector<32x1xf32>
    %cst_34 = arith.constant 3.200000e+01 : f32
    %76 = vector.broadcast %cst_34 : f32 to vector<32x1xf32>
    %77 = arith.divf %75, %76 : vector<32x1xf32>
    %78 = arith.mulf %73, %73 : vector<32x32xf32>
    %cst_35 = arith.constant dense<0.000000e+00> : vector<32xf32>
    %79 = vector.multi_reduction <add>, %78, %cst_35 [1] : vector<32x32xf32> to vector<32xf32>
    %80 = vector.shape_cast %79 : vector<32xf32> to vector<32x1xf32>
    %cst_36 = arith.constant 3.200000e+01 : f32
    %81 = vector.broadcast %cst_36 : f32 to vector<32x1xf32>
    %82 = arith.divf %80, %81 : vector<32x1xf32>
    %83 = vector.broadcast %77 : vector<32x1xf32> to vector<32x32xf32>
    %84 = arith.subf %73, %83 : vector<32x32xf32>
    %85 = arith.mulf %77, %77 : vector<32x1xf32>
    %86 = arith.subf %82, %85 : vector<32x1xf32>
    %cst_37 = arith.constant 9.99999974E-6 : f32
    %87 = vector.broadcast %cst_37 : f32 to vector<32x1xf32>
    %88 = arith.addf %86, %87 : vector<32x1xf32>
    %89 = math.rsqrt %88 : vector<32x1xf32>
    %90 = vector.broadcast %89 : vector<32x1xf32> to vector<32x32xf32>
    %91 = arith.mulf %84, %90 : vector<32x32xf32>
    %92 = vector.broadcast %11 : vector<1x32xf32> to vector<32x32xf32>
    %93 = arith.mulf %91, %92 : vector<32x32xf32>
    %94 = vector.broadcast %13 : vector<1x32xf32> to vector<32x32xf32>
    %95 = arith.addf %93, %94 : vector<32x32xf32>
    %c0_38 = arith.constant 0 : index
    %c128 = arith.constant 128 : index
    %96 = vector.load %arg4[%c0_38, %c128] : memref<32x384xf32, #tpu.memory_space<vmem>>, vector<32x96xf32>
    %c0_39 = arith.constant 0 : index
    %c224 = arith.constant 224 : index
    %97 = vector.load %arg4[%c0_39, %c224] : memref<32x384xf32, #tpu.memory_space<vmem>>, vector<32x32xf32>
    %c32 = arith.constant 32 : index
    %c0_40 = arith.constant 0 : index
    %98 = vector.load %arg5[%c32, %c0_40] : memref<64x32xf32, #tpu.memory_space<vmem>>, vector<32x32xf32>
    %c6 = arith.constant 6 : index
    %c0_41 = arith.constant 0 : index
    %99 = vector.load %arg7[%c6, %c0_41] : memref<14x128xf32, #tpu.memory_space<vmem>>, vector<1x128xf32>
    %100 = vector.extract_strided_slice %99 {offsets = [0, 0], sizes = [1, 96], strides = [1, 1]} : vector<1x128xf32> to vector<1x96xf32>
    %c7 = arith.constant 7 : index
    %c0_42 = arith.constant 0 : index
    %101 = vector.load %arg7[%c7, %c0_42] : memref<14x128xf32, #tpu.memory_space<vmem>>, vector<1x128xf32>
    %102 = vector.extract_strided_slice %101 {offsets = [0, 0], sizes = [1, 32], strides = [1, 1]} : vector<1x128xf32> to vector<1x32xf32>
    %c8 = arith.constant 8 : index
    %c0_43 = arith.constant 0 : index
    %103 = vector.load %arg7[%c8, %c0_43] : memref<14x128xf32, #tpu.memory_space<vmem>>, vector<1x128xf32>
    %104 = vector.extract_strided_slice %103 {offsets = [0, 0], sizes = [1, 32], strides = [1, 1]} : vector<1x128xf32> to vector<1x32xf32>
    %c9 = arith.constant 9 : index
    %c0_44 = arith.constant 0 : index
    %105 = vector.load %arg7[%c9, %c0_44] : memref<14x128xf32, #tpu.memory_space<vmem>>, vector<1x128xf32>
    %106 = vector.extract_strided_slice %105 {offsets = [0, 0], sizes = [1, 32], strides = [1, 1]} : vector<1x128xf32> to vector<1x32xf32>
    %c10 = arith.constant 10 : index
    %c0_45 = arith.constant 0 : index
    %107 = vector.load %arg7[%c10, %c0_45] : memref<14x128xf32, #tpu.memory_space<vmem>>, vector<1x128xf32>
    %108 = vector.extract_strided_slice %107 {offsets = [0, 0], sizes = [1, 32], strides = [1, 1]} : vector<1x128xf32> to vector<1x32xf32>
    %c11 = arith.constant 11 : index
    %c0_46 = arith.constant 0 : index
    %109 = vector.load %arg7[%c11, %c0_46] : memref<14x128xf32, #tpu.memory_space<vmem>>, vector<1x128xf32>
    %110 = vector.extract_strided_slice %109 {offsets = [0, 0], sizes = [1, 32], strides = [1, 1]} : vector<1x128xf32> to vector<1x32xf32>
    %cst_47 = arith.constant dense<0.000000e+00> : vector<32x32xf32>
    %111 = tpu.matmul %0, %95, %cst_47 {dimension_numbers = #tpu.dot_dimension_numbers<[1], [0], [0], [1], [0, 0, 1, 1], [], []>} : vector<32x32xf32>, vector<32x32xf32>, vector<32x32xf32> -> vector<32x32xf32>
    %cst_48 = arith.constant dense<0.000000e+00> : vector<32x96xf32>
    %112 = tpu.matmul %111, %96, %cst_48 {dimension_numbers = #tpu.dot_dimension_numbers<[1], [0], [0], [1], [0, 0, 1, 1], [], []>} : vector<32x32xf32>, vector<32x96xf32>, vector<32x96xf32> -> vector<32x96xf32>
    %113 = vector.broadcast %100 : vector<1x96xf32> to vector<32x96xf32>
    %114 = arith.addf %112, %113 : vector<32x96xf32>
    %115 = vector.extract_strided_slice %114 {offsets = [0, 0], sizes = [32, 32], strides = [1, 1]} : vector<32x96xf32> to vector<32x32xf32>
    %116 = vector.extract_strided_slice %114 {offsets = [0, 32], sizes = [32, 32], strides = [1, 1]} : vector<32x96xf32> to vector<32x32xf32>
    %117 = vector.extract_strided_slice %114 {offsets = [0, 64], sizes = [32, 32], strides = [1, 1]} : vector<32x96xf32> to vector<32x32xf32>
    %cst_49 = arith.constant dense<0.000000e+00> : vector<32x32xf32>
    %118 = tpu.matmul %115, %116, %cst_49 {dimension_numbers = #tpu.dot_dimension_numbers<[1], [1], [0], [0], [0, 0, 1, 0], [], []>} : vector<32x32xf32>, vector<32x32xf32>, vector<32x32xf32> -> vector<32x32xf32>
    %119 = arith.addf %118, %36 : vector<32x32xf32>
    %cst_50 = arith.constant dense<0xFF800000> : vector<32xf32>
    %120 = vector.multi_reduction <maximumf>, %119, %cst_50 [1] : vector<32x32xf32> to vector<32xf32>
    %121 = vector.shape_cast %120 : vector<32xf32> to vector<32x1xf32>
    %122 = vector.broadcast %121 : vector<32x1xf32> to vector<32x32xf32>
    %123 = arith.subf %119, %122 : vector<32x32xf32>
    %124 = math.exp %123 : vector<32x32xf32>
    %cst_51 = arith.constant dense<0.000000e+00> : vector<32xf32>
    %125 = vector.multi_reduction <add>, %124, %cst_51 [1] : vector<32x32xf32> to vector<32xf32>
    %126 = vector.shape_cast %125 : vector<32xf32> to vector<32x1xf32>
    %127 = vector.broadcast %126 : vector<32x1xf32> to vector<32x32xf32>
    %128 = arith.divf %124, %127 : vector<32x32xf32>
    %cst_52 = arith.constant dense<0.000000e+00> : vector<32x32xf32>
    %129 = tpu.matmul %128, %117, %cst_52 {dimension_numbers = #tpu.dot_dimension_numbers<[1], [0], [0], [1], [0, 0, 1, 1], [], []>} : vector<32x32xf32>, vector<32x32xf32>, vector<32x32xf32> -> vector<32x32xf32>
    %cst_53 = arith.constant dense<0.000000e+00> : vector<32x32xf32>
    %130 = tpu.matmul %0, %129, %cst_53 {dimension_numbers = #tpu.dot_dimension_numbers<[1], [0], [0], [1], [0, 0, 1, 1], [], []>} : vector<32x32xf32>, vector<32x32xf32>, vector<32x32xf32> -> vector<32x32xf32>
    %131 = vector.broadcast %102 : vector<1x32xf32> to vector<32x32xf32>
    %132 = arith.addf %130, %131 : vector<32x32xf32>
    %cst_54 = arith.constant dense<0.000000e+00> : vector<32xf32>
    %133 = vector.multi_reduction <add>, %132, %cst_54 [1] : vector<32x32xf32> to vector<32xf32>
    %134 = vector.shape_cast %133 : vector<32xf32> to vector<32x1xf32>
    %cst_55 = arith.constant 3.200000e+01 : f32
    %135 = vector.broadcast %cst_55 : f32 to vector<32x1xf32>
    %136 = arith.divf %134, %135 : vector<32x1xf32>
    %137 = arith.mulf %132, %132 : vector<32x32xf32>
    %cst_56 = arith.constant dense<0.000000e+00> : vector<32xf32>
    %138 = vector.multi_reduction <add>, %137, %cst_56 [1] : vector<32x32xf32> to vector<32xf32>
    %139 = vector.shape_cast %138 : vector<32xf32> to vector<32x1xf32>
    %cst_57 = arith.constant 3.200000e+01 : f32
    %140 = vector.broadcast %cst_57 : f32 to vector<32x1xf32>
    %141 = arith.divf %139, %140 : vector<32x1xf32>
    %142 = vector.broadcast %136 : vector<32x1xf32> to vector<32x32xf32>
    %143 = arith.subf %132, %142 : vector<32x32xf32>
    %144 = arith.mulf %136, %136 : vector<32x1xf32>
    %145 = arith.subf %141, %144 : vector<32x1xf32>
    %cst_58 = arith.constant 9.99999974E-6 : f32
    %146 = vector.broadcast %cst_58 : f32 to vector<32x1xf32>
    %147 = arith.addf %145, %146 : vector<32x1xf32>
    %148 = math.rsqrt %147 : vector<32x1xf32>
    %149 = vector.broadcast %148 : vector<32x1xf32> to vector<32x32xf32>
    %150 = arith.mulf %143, %149 : vector<32x32xf32>
    %151 = vector.broadcast %104 : vector<1x32xf32> to vector<32x32xf32>
    %152 = arith.mulf %150, %151 : vector<32x32xf32>
    %153 = vector.broadcast %106 : vector<1x32xf32> to vector<32x32xf32>
    %154 = arith.addf %152, %153 : vector<32x32xf32>
    %155 = arith.addf %154, %95 : vector<32x32xf32>
    %cst_59 = arith.constant dense<0.000000e+00> : vector<32x32xf32>
    %156 = tpu.matmul %0, %155, %cst_59 {dimension_numbers = #tpu.dot_dimension_numbers<[1], [0], [0], [1], [0, 0, 1, 1], [], []>} : vector<32x32xf32>, vector<32x32xf32>, vector<32x32xf32> -> vector<32x32xf32>
    %cst_60 = arith.constant dense<0.000000e+00> : vector<32x32xf32>
    %157 = tpu.matmul %156, %97, %cst_60 {dimension_numbers = #tpu.dot_dimension_numbers<[1], [0], [0], [1], [0, 0, 1, 1], [], []>} : vector<32x32xf32>, vector<32x32xf32>, vector<32x32xf32> -> vector<32x32xf32>
    %158 = vector.broadcast %108 : vector<1x32xf32> to vector<32x32xf32>
    %159 = arith.addf %157, %158 : vector<32x32xf32>
    %cst_61 = arith.constant 0.000000e+00 : f32
    %160 = vector.broadcast %cst_61 : f32 to vector<32x32xf32>
    %161 = arith.maximumf %159, %160 : vector<32x32xf32>
    %cst_62 = arith.constant dense<0.000000e+00> : vector<32x32xf32>
    %162 = tpu.matmul %0, %161, %cst_62 {dimension_numbers = #tpu.dot_dimension_numbers<[1], [0], [0], [1], [0, 0, 1, 1], [], []>} : vector<32x32xf32>, vector<32x32xf32>, vector<32x32xf32> -> vector<32x32xf32>
    %cst_63 = arith.constant dense<0.000000e+00> : vector<32x32xf32>
    %163 = tpu.matmul %162, %98, %cst_63 {dimension_numbers = #tpu.dot_dimension_numbers<[1], [0], [0], [1], [0, 0, 1, 1], [], []>} : vector<32x32xf32>, vector<32x32xf32>, vector<32x32xf32> -> vector<32x32xf32>
    %164 = vector.broadcast %110 : vector<1x32xf32> to vector<32x32xf32>
    %165 = arith.addf %163, %164 : vector<32x32xf32>
    %cst_64 = arith.constant dense<0.000000e+00> : vector<32xf32>
    %166 = vector.multi_reduction <add>, %165, %cst_64 [1] : vector<32x32xf32> to vector<32xf32>
    %167 = vector.shape_cast %166 : vector<32xf32> to vector<32x1xf32>
    %cst_65 = arith.constant 3.200000e+01 : f32
    %168 = vector.broadcast %cst_65 : f32 to vector<32x1xf32>
    %169 = arith.divf %167, %168 : vector<32x1xf32>
    %170 = arith.mulf %165, %165 : vector<32x32xf32>
    %cst_66 = arith.constant dense<0.000000e+00> : vector<32xf32>
    %171 = vector.multi_reduction <add>, %170, %cst_66 [1] : vector<32x32xf32> to vector<32xf32>
    %172 = vector.shape_cast %171 : vector<32xf32> to vector<32x1xf32>
    %cst_67 = arith.constant 3.200000e+01 : f32
    %173 = vector.broadcast %cst_67 : f32 to vector<32x1xf32>
    %174 = arith.divf %172, %173 : vector<32x1xf32>
    %175 = vector.broadcast %169 : vector<32x1xf32> to vector<32x32xf32>
    %176 = arith.subf %165, %175 : vector<32x32xf32>
    %177 = arith.mulf %169, %169 : vector<32x1xf32>
    %178 = arith.subf %174, %177 : vector<32x1xf32>
    %cst_68 = arith.constant 9.99999974E-6 : f32
    %179 = vector.broadcast %cst_68 : f32 to vector<32x1xf32>
    %180 = arith.addf %178, %179 : vector<32x1xf32>
    %181 = math.rsqrt %180 : vector<32x1xf32>
    %182 = vector.broadcast %181 : vector<32x1xf32> to vector<32x32xf32>
    %183 = arith.mulf %176, %182 : vector<32x32xf32>
    %184 = vector.broadcast %104 : vector<1x32xf32> to vector<32x32xf32>
    %185 = arith.mulf %183, %184 : vector<32x32xf32>
    %186 = vector.broadcast %106 : vector<1x32xf32> to vector<32x32xf32>
    %187 = arith.addf %185, %186 : vector<32x32xf32>
    %c0_69 = arith.constant 0 : index
    %c0_70 = arith.constant 0 : index
    %188 = vector.load %arg2[%c0_69, %c0_70] : memref<4x32xf32, #tpu.memory_space<vmem>>, vector<4x32xf32>
    %cst_71 = arith.constant dense<0.000000e+00> : vector<4x32xf32>
    %189 = tpu.matmul %188, %187, %cst_71 {dimension_numbers = #tpu.dot_dimension_numbers<[1], [0], [0], [1], [0, 0, 1, 1], [], []>} : vector<4x32xf32>, vector<32x32xf32>, vector<4x32xf32> -> vector<4x32xf32>
    %190 = vector.extract_strided_slice %189 {offsets = [0, 0], sizes = [2, 32], strides = [1, 1]} : vector<4x32xf32> to vector<2x32xf32>
    %191 = vector.extract_strided_slice %189 {offsets = [2, 0], sizes = [2, 32], strides = [1, 1]} : vector<4x32xf32> to vector<2x32xf32>
    %192 = arith.subf %190, %191 : vector<2x32xf32>
    %193 = math.absf %192 : vector<2x32xf32>
    %c0_72 = arith.constant 0 : index
    %c256 = arith.constant 256 : index
    %194 = vector.load %arg4[%c0_72, %c256] : memref<32x384xf32, #tpu.memory_space<vmem>>, vector<32x128xf32>
    %c12 = arith.constant 12 : index
    %c0_73 = arith.constant 0 : index
    %195 = vector.load %arg7[%c12, %c0_73] : memref<14x128xf32, #tpu.memory_space<vmem>>, vector<1x128xf32>
    %c13 = arith.constant 13 : index
    %c0_74 = arith.constant 0 : index
    %196 = vector.load %arg7[%c13, %c0_74] : memref<14x128xf32, #tpu.memory_space<vmem>>, vector<1x128xf32>
    %197 = vector.extract_strided_slice %196 {offsets = [0, 0], sizes = [1, 4], strides = [1, 1]} : vector<1x128xf32> to vector<1x4xf32>
    %cst_75 = arith.constant dense<0.000000e+00> : vector<2x128xf32>
    %198 = tpu.matmul %193, %194, %cst_75 {dimension_numbers = #tpu.dot_dimension_numbers<[1], [0], [0], [1], [0, 0, 1, 1], [], []>} : vector<2x32xf32>, vector<32x128xf32>, vector<2x128xf32> -> vector<2x128xf32>
    %199 = vector.broadcast %195 : vector<1x128xf32> to vector<2x128xf32>
    %200 = arith.addf %198, %199 : vector<2x128xf32>
    %cst_76 = arith.constant 0.000000e+00 : f32
    %201 = vector.broadcast %cst_76 : f32 to vector<2x128xf32>
    %202 = arith.maximumf %200, %201 : vector<2x128xf32>
    %c0_77 = arith.constant 0 : index
    %c0_78 = arith.constant 0 : index
    %203 = vector.load %arg6[%c0_77, %c0_78] : memref<128x4xf32, #tpu.memory_space<vmem>>, vector<128x4xf32>
    %cst_79 = arith.constant dense<0.000000e+00> : vector<2x4xf32>
    %204 = tpu.matmul %202, %203, %cst_79 {dimension_numbers = #tpu.dot_dimension_numbers<[1], [0], [0], [1], [0, 0, 1, 1], [], []>} : vector<2x128xf32>, vector<128x4xf32>, vector<2x4xf32> -> vector<2x4xf32>
    %205 = vector.broadcast %197 : vector<1x4xf32> to vector<2x4xf32>
    %206 = arith.addf %204, %205 : vector<2x4xf32>
    %207 = arith.negf %206 : vector<2x4xf32>
    %208 = math.exp %207 : vector<2x4xf32>
    %cst_80 = arith.constant 1.000000e+00 : f32
    %209 = vector.broadcast %cst_80 : f32 to vector<2x4xf32>
    %210 = arith.addf %209, %208 : vector<2x4xf32>
    %211 = arith.divf %209, %210 : vector<2x4xf32>
    %c0_81 = arith.constant 0 : index
    %c0_82 = arith.constant 0 : index
    %212 = vector.load %arg8[%c0_81, %c0_82] : memref<2x4xf32, #tpu.memory_space<vmem>>, vector<2x4xf32>
    tpu.vector_store %arg8[%c0_81, %c0_82], %211 {strides = array<i32>} : memref<2x4xf32, #tpu.memory_space<vmem>>, vector<2x4xf32>,
    return
  }
}

</mosaic_0001>

<llo_original>
// kernel: tpu_custom_call.1
$region0: #{tpu_custom_call.1}
  #allocation0 [shape = 'u32[]', space=smem, size = 0x4, offset = 0x4, fixed_abs, tag = 'smem constant byte address 0x4 - core index']
  #allocation1 [shape = 'u32[144,128]{1,0:T(1,128)}', space=vmem, size = 0x12000, scoped, tag = 'internal scratch']
  %s0 = inlined_call_operand.vmem [shape: f32[32,32], index: 0, kind: input, shape index: {}]
  %s1 = inlined_call_operand.vmem [shape: f32[32,32], index: 1, kind: input, shape index: {}]
  %s2 = inlined_call_operand.vmem [shape: f32[4,32], index: 2, kind: input, shape index: {}]
  %s3 = inlined_call_operand.vmem [shape: f32[32,32], index: 3, kind: input, shape index: {}]
  %s4 = inlined_call_operand.vmem [shape: f32[32,384], index: 4, kind: input, shape index: {}]
  %s5 = inlined_call_operand.vmem [shape: f32[64,32], index: 5, kind: input, shape index: {}]
  %s6 = inlined_call_operand.vmem [shape: f32[128,4], index: 6, kind: input, shape index: {}]
  %s7 = inlined_call_operand.vmem [shape: f32[14,128], index: 7, kind: input, shape index: {}]
  %s8 = inlined_call_operand.hbm [shape: f32[2,4], index: 8, kind: output, shape index: {}]
  %s9 = sld [smem:[#allocation0]]
  $region42: #{tpu_custom_call.1} parent=0
    _
  %s11 = ssub.s32 1, %s9
  %s12 = scalar_select 0, %s11, %s9
  $region1: #{tpu_custom_call.1} parent=0
    #allocation2 [shape = 'u8[1024]{0}', space=vmem, size = 0x400, scoped, tag = 'output window, operand 0, single buffered']
    #allocation3 [shape = 's32[1]{0}', space=sflag, size = 0x4, scoped, tag = 'scoped memory for tpu_custom_call.1']
    %13 = vsyncpa [#allocation3], 0
    // Predicated region
    $region2: #{tpu_custom_call.1} parent=1 // pred_check
      _
    $region3: #{tpu_custom_call.1} parent=1 // pred_check_branch
      %15 = sbr.rel (0) target = $region5
    $region4: #{tpu_custom_call.1} parent=1 // pred_region
      _
    $region5: #{tpu_custom_call.1} parent=1 // pred_fallthru
      _
    // Predicated region
    $region6: #{tpu_custom_call.1} parent=1 // pred_check
      _
    $region7: #{tpu_custom_call.1} parent=1 // pred_check_branch
      %17 = sbr.rel (0) target = $region9
    $region8: #{tpu_custom_call.1} parent=1 // pred_region
      _
    $region9: #{tpu_custom_call.1} parent=1 // pred_fallthru
      _
    // Predicated region
    $region10: #{tpu_custom_call.1} parent=1 // pred_check
      _
    $region11: #{tpu_custom_call.1} parent=1 // pred_check_branch
      %19 = sbr.rel (0) target = $region13
    $region12: #{tpu_custom_call.1} parent=1 // pred_region
      _
    $region13: #{tpu_custom_call.1} parent=1 // pred_fallthru
      _
    // Predicated region
    $region14: #{tpu_custom_call.1} parent=1 // pred_check
      _
    $region15: #{tpu_custom_call.1} parent=1 // pred_check_branch
      %21 = sbr.rel (0) target = $region17
    $region16: #{tpu_custom_call.1} parent=1 // pred_region
      _
    $region17: #{tpu_custom_call.1} parent=1 // pred_fallthru
      _
    // Predicated region
    $region18: #{tpu_custom_call.1} parent=1 // pred_check
      _
    $region19: #{tpu_custom_call.1} parent=1 // pred_check_branch
      %23 = sbr.rel (0) target = $region21
    $region20: #{tpu_custom_call.1} parent=1 // pred_region
      _
    $region21: #{tpu_custom_call.1} parent=1 // pred_fallthru
      _
    // Predicated region
    $region22: #{tpu_custom_call.1} parent=1 // pred_check
      _
    $region23: #{tpu_custom_call.1} parent=1 // pred_check_branch
      %25 = sbr.rel (0) target = $region25
    $region24: #{tpu_custom_call.1} parent=1 // pred_region
      _
    $region25: #{tpu_custom_call.1} parent=1 // pred_fallthru
      _
    // Predicated region
    $region26: #{tpu_custom_call.1} parent=1 // pred_check
      _
    $region27: #{tpu_custom_call.1} parent=1 // pred_check_branch
      %27 = sbr.rel (0) target = $region29
    $region28: #{tpu_custom_call.1} parent=1 // pred_region
      _
    $region29: #{tpu_custom_call.1} parent=1 // pred_fallthru
      _
    // Predicated region
    $region30: #{tpu_custom_call.1} parent=1 // pred_check
      _
    $region31: #{tpu_custom_call.1} parent=1 // pred_check_branch
      %29 = sbr.rel (0) target = $region33
    $region32: #{tpu_custom_call.1} parent=1 // pred_region
      _
    $region33: #{tpu_custom_call.1} parent=1 // pred_fallthru
      _
    %v30 = vld [vmem:[%s0] sm:$0xff]
    %v31 = vld [vmem:[%s0 + $0x8] sm:$0xff]
    %v32 = vld [vmem:[%s0 + $0x10] sm:$0xff]
    %v33 = vld [vmem:[%s0 + $0x18] sm:$0xff]
    %v34 = vld [vmem:[%s3] sm:$0xff]
    %v35 = vld [vmem:[%s3 + $0x8] sm:$0xff]
    %v36 = vld [vmem:[%s3 + $0x10] sm:$0xff]
    %v37 = vld [vmem:[%s3 + $0x18] sm:$0xff]
    %v38 = vld [vmem:[%s1] sm:$0xff]
    %v39 = vld [vmem:[%s1 + $0x8] sm:$0xff]
    %v40 = vld [vmem:[%s1 + $0x10] sm:$0xff]
    %v41 = vld [vmem:[%s1 + $0x18] sm:$0xff]
    %v42 = vld [vmem:[%s4] sm:$0xff]
    %v43 = vld [vmem:[%s4 + $0x18] sm:$0xff]
    %v44 = vld [vmem:[%s4 + $0x30] sm:$0xff]
    %v45 = vld [vmem:[%s4 + $0x48] sm:$0xff]
    %v46 = vld [vmem:[%s5] sm:$0xff]
    %v47 = vld [vmem:[%s5 + $0x8] sm:$0xff]
    %v48 = vld [vmem:[%s5 + $0x10] sm:$0xff]
    %v49 = vld [vmem:[%s5 + $0x18] sm:$0xff]
    %v50 = vld [vmem:[%s7] sm:$0x1]
    %v51 = vld [vmem:[%s7 + $0x1] sm:$0x1]
    %v52 = vld [vmem:[%s7 + $0x2] sm:$0x1]
    %v53 = vld [vmem:[%s7 + $0x3] sm:$0x1]
    %v54 = vld [vmem:[%s7 + $0x4] sm:$0x1]
    %v55 = vld [vmem:[%s7 + $0x5] sm:$0x1]
    %vm56 = vcmask 261120
    %v58 = vsel %vm56, %v30, 0
    %v61 = vsel %vm56, %v31, 0
    %v64 = vsel %vm56, %v32, 0
    %v67 = vsel %vm56, %v33, 0
    %69 = vmatprep.subr.mxu0 0.0
    %70 = vmatpush1.msra.mxu0 0.0
    %71 = vmatprep.subr.mxu0 0.0
    %72 = vmatpush1.msra.mxu0 0.0
    %73 = vmatprep.subr.mxu0 0.0
    %74 = vmatpush1.msra.mxu0 0.0
    %75 = vmatprep.subr.mxu0 0.0
    %76 = vmatpush1.msra.mxu0 0.0
    %77 = vmatprep.subr.mxu0 0.0
    %78 = vmatpush1.msra.mxu0 0.0
    %79 = vmatprep.subr.mxu0 0.0
    %80 = vmatpush1.msra.mxu0 0.0
    %81 = vmatprep.subr.mxu0 0.0
    %82 = vmatpush1.msra.mxu0 0.0
    %83 = vmatprep.subr.mxu0 0.0
    %84 = vmatpush1.msra.mxu0 0.0
    %85 = vmatprep.subr.mxu0 0.0
    %86 = vmatpush1.msra.mxu0 0.0
    %87 = vmatprep.subr.mxu0 0.0
    %88 = vmatpush1.msra.mxu0 0.0
    %89 = vmatprep.subr.mxu0 0.0
    %90 = vmatpush1.msra.mxu0 0.0
    %91 = vmatprep.subr.mxu0 0.0
    %92 = vmatpush1.msra.mxu0 0.0
    %93 = vmatprep.subr.mxu0 0.0
    %94 = vmatpush1.msra.mxu0 %v41
    %95 = vmatprep.subr.mxu0 0.0
    %96 = vmatpush1.msra.mxu0 %v40
    %97 = vmatprep.subr.mxu0 0.0
    %98 = vmatpush1.msra.mxu0 %v39
    %99 = vmatprep.subr.mxu0 0.0
    %100 = vmatpush1.msra.mxu0 %v38
    %101 = vmatprep.subr.mxu0 0.0
    %102 = vmatpush2.msra.mxu0 0.0
    %103 = vmatprep.subr.mxu0 0.0
    %104 = vmatpush2.msra.mxu0 0.0
    %105 = vmatprep.subr.mxu0 0.0
    %106 = vmatpush2.msra.mxu0 0.0
    %107 = vmatprep.subr.mxu0 0.0
    %108 = vmatpush2.msra.mxu0 0.0
    %109 = vmatprep.subr.mxu0 0.0
    %110 = vmatpush2.msra.mxu0 0.0
    %111 = vmatprep.subr.mxu0 0.0
    %112 = vmatpush2.msra.mxu0 0.0
    %113 = vmatprep.subr.mxu0 0.0
    %114 = vmatpush2.msra.mxu0 0.0
    %115 = vmatprep.subr.mxu0 0.0
    %116 = vmatpush2.msra.mxu0 0.0
    %117 = vmatprep.subr.mxu0 0.0
    %118 = vmatpush2.msra.mxu0 0.0
    %119 = vmatprep.subr.mxu0 0.0
    %120 = vmatpush2.msra.mxu0 0.0
    %121 = vmatprep.subr.mxu0 0.0
    %122 = vmatpush2.msra.mxu0 0.0
    %123 = vmatprep.subr.mxu0 0.0
    %124 = vmatpush2.msra.mxu0 0.0
    %125 = vmatprep.subr.mxu0 0.0
    %126 = vmatpush2.msra.mxu0 0.0
    %127 = vmatprep.subr.mxu0 0.0
    %128 = vmatpush2.msra.mxu0 0.0
    %129 = vmatprep.subr.mxu0 0.0
    %130 = vmatpush2.msra.mxu0 0.0
    %131 = vmatprep.subr.mxu0 0.0
    %132 = vmatpush2.msra.mxu0 0.0
    %133 = vmatprep.mubr.f32.mxu0 0.0
    %134 = vmatmul.mubr.f32.gmra.mxu0 %v58
    %v135 = vpop.f32.mrf.mxu0
    %v136 = vadd.f32 0.0, %v135
    %v137 = vpop.f32.mrf.mxu0
    %138 = vmatprep.mubr.f32.mxu0 0.0
    %139 = vmatmul.mubr.f32.gmra.mxu0 %v61
    %v140 = vpop.f32.mrf.mxu0
    %v141 = vadd.f32 0.0, %v140
    %v142 = vpop.f32.mrf.mxu0
    %143 = vmatprep.mubr.f32.mxu0 0.0
    %144 = vmatmul.mubr.f32.gmra.mxu0 %v64
    %v145 = vpop.f32.mrf.mxu0
    %v146 = vadd.f32 0.0, %v145
    %v147 = vpop.f32.mrf.mxu0
    %148 = vmatprep.mubr.f32.mxu0 0.0
    %149 = vmatmul.mubr.f32.gmra.mxu0 %v67
    %v150 = vpop.f32.mrf.mxu0
    %v151 = vadd.f32 0.0, %v150
    %v152 = vpop.f32.mrf.mxu0
    %153 = vdwg.mxu0
    %v154 = vlaneseq
    %v155 = vshrl.u32 %v154, 7
    %v156 = vsub.s32 0, %v155
    %v157 = vrot.slane %v50, %v156
    %v159 = vsel %vm56, %v136, 0
    %v162 = vsel %vm56, %v141, 0
    %v165 = vsel %vm56, %v146, 0
    %v168 = vsel %vm56, %v151, 0
    %170 = vmatprep.subr.mxu0 0.0
    %171 = vmatpush1.msra.mxu0 0.0
    %172 = vmatprep.subr.mxu0 0.0
    %173 = vmatpush1.msra.mxu0 0.0
    %174 = vmatprep.subr.mxu0 0.0
    %175 = vmatpush1.msra.mxu0 0.0
    %176 = vmatprep.subr.mxu0 0.0
    %177 = vmatpush1.msra.mxu0 0.0
    %178 = vmatprep.subr.mxu0 0.0
    %179 = vmatpush1.msra.mxu0 0.0
    %180 = vmatprep.subr.mxu0 0.0
    %181 = vmatpush1.msra.mxu0 0.0
    %182 = vmatprep.subr.mxu0 0.0
    %183 = vmatpush1.msra.mxu0 0.0
    %184 = vmatprep.subr.mxu0 0.0
    %185 = vmatpush1.msra.mxu0 0.0
    %186 = vmatprep.subr.mxu0 0.0
    %187 = vmatpush1.msra.mxu0 0.0
    %188 = vmatprep.subr.mxu0 0.0
    %189 = vmatpush1.msra.mxu0 0.0
    %190 = vmatprep.subr.mxu0 0.0
    %191 = vmatpush1.msra.mxu0 0.0
    %192 = vmatprep.subr.mxu0 0.0
    %193 = vmatpush1.msra.mxu0 0.0
    %194 = vmatprep.subr.mxu0 0.0
    %195 = vmatpush1.msra.mxu0 %v45
    %196 = vmatprep.subr.mxu0 0.0
    %197 = vmatpush1.msra.mxu0 %v44
    %198 = vmatprep.subr.mxu0 0.0
    %199 = vmatpush1.msra.mxu0 %v43
    %200 = vmatprep.subr.mxu0 0.0
    %201 = vmatpush1.msra.mxu0 %v42
    %202 = vmatprep.subr.mxu0 0.0
    %203 = vmatpush2.msra.mxu0 0.0
    %204 = vmatprep.subr.mxu0 0.0
    %205 = vmatpush2.msra.mxu0 0.0
    %206 = vmatprep.subr.mxu0 0.0
    %207 = vmatpush2.msra.mxu0 0.0
    %208 = vmatprep.subr.mxu0 0.0
    %209 = vmatpush2.msra.mxu0 0.0
    %210 = vmatprep.subr.mxu0 0.0
    %211 = vmatpush2.msra.mxu0 0.0
    %212 = vmatprep.subr.mxu0 0.0
    %213 = vmatpush2.msra.mxu0 0.0
    %214 = vmatprep.subr.mxu0 0.0
    %215 = vmatpush2.msra.mxu0 0.0
    %216 = vmatprep.subr.mxu0 0.0
    %217 = vmatpush2.msra.mxu0 0.0
    %218 = vmatprep.subr.mxu0 0.0
    %219 = vmatpush2.msra.mxu0 0.0
    %220 = vmatprep.subr.mxu0 0.0
    %221 = vmatpush2.msra.mxu0 0.0
    %222 = vmatprep.subr.mxu0 0.0
    %223 = vmatpush2.msra.mxu0 0.0
    %224 = vmatprep.subr.mxu0 0.0
    %225 = vmatpush2.msra.mxu0 0.0
    %226 = vmatprep.subr.mxu0 0.0
    %227 = vmatpush2.msra.mxu0 0.0
    %228 = vmatprep.subr.mxu0 0.0
    %229 = vmatpush2.msra.mxu0 0.0
    %230 = vmatprep.subr.mxu0 0.0
    %231 = vmatpush2.msra.mxu0 0.0
    %232 = vmatprep.subr.mxu0 0.0
    %233 = vmatpush2.msra.mxu0 0.0
    %234 = vmatprep.mubr.f32.mxu0 0.0
    %235 = vmatmul.mubr.f32.gmra.mxu0 %v159
    %v236 = vpop.f32.mrf.mxu0
    %v237 = vadd.f32 %v157, %v236
    %v238 = vpop.f32.mrf.mxu0
    %239 = vmatprep.mubr.f32.mxu0 0.0
    %240 = vmatmul.mubr.f32.gmra.mxu0 %v162
    %v241 = vpop.f32.mrf.mxu0
    %v242 = vadd.f32 %v157, %v241
    %v243 = vpop.f32.mrf.mxu0
    %244 = vmatprep.mubr.f32.mxu0 0.0
    %245 = vmatmul.mubr.f32.gmra.mxu0 %v165
    %v246 = vpop.f32.mrf.mxu0
    %v247 = vadd.f32 %v157, %v246
    %v248 = vpop.f32.mrf.mxu0
    %249 = vmatprep.mubr.f32.mxu0 0.0
    %250 = vmatmul.mubr.f32.gmra.mxu0 %v168
    %v251 = vpop.f32.mrf.mxu0
    %v252 = vadd.f32 %v157, %v251
    %v253 = vpop.f32.mrf.mxu0
    %254 = vdwg.mxu0
    %259 = vrot.lane.b32.xlu0 %v237, 96
    %v260 = vpop.permute.xlu0 %259
    %261 = vrot.lane.b32.xlu0 %v242, 96
    %v262 = vpop.permute.xlu0 %261
    %263 = vrot.lane.b32.xlu0 %v247, 96
    %v264 = vpop.permute.xlu0 %263
    %265 = vrot.lane.b32.xlu0 %v252, 96
    %v266 = vpop.permute.xlu0 %265
    %v267 = vsel %vm56, %v237, 0
    %v269 = vsel %vm56, %v242, 0
    %v271 = vsel %vm56, %v247, 0
    %v273 = vsel %vm56, %v252, 0
    %v275 = vsel %vm56, %v260, 0
    %v277 = vsel %vm56, %v262, 0
    %v279 = vsel %vm56, %v264, 0
    %v281 = vsel %vm56, %v266, 0
    %283 = vmatprep.subr.mxu0 0.0
    %284 = vmatpush1.xpose.msra.mxu0 0.0
    %285 = vmatprep.subr.mxu0 0.0
    %286 = vmatpush1.xpose.msra.mxu0 0.0
    %287 = vmatprep.subr.mxu0 0.0
    %288 = vmatpush1.xpose.msra.mxu0 0.0
    %289 = vmatprep.subr.mxu0 0.0
    %290 = vmatpush1.xpose.msra.mxu0 0.0
    %291 = vmatprep.subr.mxu0 0.0
    %292 = vmatpush1.xpose.msra.mxu0 0.0
    %293 = vmatprep.subr.mxu0 0.0
    %294 = vmatpush1.xpose.msra.mxu0 0.0
    %295 = vmatprep.subr.mxu0 0.0
    %296 = vmatpush1.xpose.msra.mxu0 0.0
    %297 = vmatprep.subr.mxu0 0.0
    %298 = vmatpush1.xpose.msra.mxu0 0.0
    %299 = vmatprep.subr.mxu0 0.0
    %300 = vmatpush1.xpose.msra.mxu0 0.0
    %301 = vmatprep.subr.mxu0 0.0
    %302 = vmatpush1.xpose.msra.mxu0 0.0
    %303 = vmatprep.subr.mxu0 0.0
    %304 = vmatpush1.xpose.msra.mxu0 0.0
    %305 = vmatprep.subr.mxu0 0.0
    %306 = vmatpush1.xpose.msra.mxu0 0.0
    %307 = vmatprep.subr.mxu0 0.0
    %308 = vmatpush1.xpose.msra.mxu0 %v281
    %309 = vmatprep.subr.mxu0 0.0
    %310 = vmatpush1.xpose.msra.mxu0 %v279
    %311 = vmatprep.subr.mxu0 0.0
    %312 = vmatpush1.xpose.msra.mxu0 %v277
    %313 = vmatprep.subr.mxu0 0.0
    %314 = vmatpush1.xpose.msra.mxu0 %v275
    %315 = vmatprep.subr.mxu0 0.0
    %316 = vmatpush2.xpose.msra.mxu0 0.0
    %317 = vmatprep.subr.mxu0 0.0
    %318 = vmatpush2.xpose.msra.mxu0 0.0
    %319 = vmatprep.subr.mxu0 0.0
    %320 = vmatpush2.xpose.msra.mxu0 0.0
    %321 = vmatprep.subr.mxu0 0.0
    %322 = vmatpush2.xpose.msra.mxu0 0.0
    %323 = vmatprep.subr.mxu0 0.0
    %324 = vmatpush2.xpose.msra.mxu0 0.0
    %325 = vmatprep.subr.mxu0 0.0
    %326 = vmatpush2.xpose.msra.mxu0 0.0
    %327 = vmatprep.subr.mxu0 0.0
    %328 = vmatpush2.xpose.msra.mxu0 0.0
    %329 = vmatprep.subr.mxu0 0.0
    %330 = vmatpush2.xpose.msra.mxu0 0.0
    %331 = vmatprep.subr.mxu0 0.0
    %332 = vmatpush2.xpose.msra.mxu0 0.0
    %333 = vmatprep.subr.mxu0 0.0
    %334 = vmatpush2.xpose.msra.mxu0 0.0
    %335 = vmatprep.subr.mxu0 0.0
    %336 = vmatpush2.xpose.msra.mxu0 0.0
    %337 = vmatprep.subr.mxu0 0.0
    %338 = vmatpush2.xpose.msra.mxu0 0.0
    %339 = vmatprep.subr.mxu0 0.0
    %340 = vmatpush2.xpose.msra.mxu0 0.0
    %341 = vmatprep.subr.mxu0 0.0
    %342 = vmatpush2.xpose.msra.mxu0 0.0
    %343 = vmatprep.subr.mxu0 0.0
    %344 = vmatpush2.xpose.msra.mxu0 0.0
    %345 = vmatprep.subr.mxu0 0.0
    %346 = vmatpush2.xpose.msra.mxu0 0.0
    %347 = vmatprep.mubr.f32.mxu0 0.0
    %348 = vmatmul.mubr.f32.gmra.mxu0 %v267
    %v349 = vpop.f32.mrf.mxu0
    %v350 = vadd.f32 %v34, %v349
    %v351 = vpop.f32.mrf.mxu0
    %352 = vmatprep.mubr.f32.mxu0 0.0
    %353 = vmatmul.mubr.f32.gmra.mxu0 %v269
    %v354 = vpop.f32.mrf.mxu0
    %v355 = vadd.f32 %v35, %v354
    %v356 = vpop.f32.mrf.mxu0
    %357 = vmatprep.mubr.f32.mxu0 0.0
    %358 = vmatmul.mubr.f32.gmra.mxu0 %v271
    %v359 = vpop.f32.mrf.mxu0
    %v360 = vadd.f32 %v36, %v359
    %v361 = vpop.f32.mrf.mxu0
    %362 = vmatprep.mubr.f32.mxu0 0.0
    %363 = vmatmul.mubr.f32.gmra.mxu0 %v273
    %v364 = vpop.f32.mrf.mxu0
    %v365 = vadd.f32 %v37, %v364
    %v366 = vpop.f32.mrf.mxu0
    %367 = vdwg.mxu0
    %v368 = vsel %vm56, %v350, -inf
    %369 = vmax.xlane.f32.xlu0 %v368
    %v370 = vpop.xlane.xlu0 %369
    %v371 = vsel %vm56, %v355, -inf
    %372 = vmax.xlane.f32.xlu0 %v371
    %v373 = vpop.xlane.xlu0 %372
    %v374 = vsel %vm56, %v360, -inf
    %375 = vmax.xlane.f32.xlu0 %v374
    %v376 = vpop.xlane.xlu0 %375
    %v377 = vsel %vm56, %v365, -inf
    %378 = vmax.xlane.f32.xlu0 %v377
    %v379 = vpop.xlane.xlu0 %378
    %v380 = vsub.f32 %v350, %v370
    %v381 = vsub.f32 %v355, %v373
    %v382 = vsub.f32 %v360, %v376
    %v383 = vsub.f32 %v365, %v379
    %v384 = vmul.f32 %v380, 1.442695
    %v385 = vpow.pop %v384
    %v386 = vmul.f32 %v381, 1.442695
    %v387 = vpow.pop %v386
    %v388 = vmul.f32 %v382, 1.442695
    %v389 = vpow.pop %v388
    %v390 = vmul.f32 %v383, 1.442695
    %v391 = vpow.pop %v390
    %v392 = vsel %vm56, %v385, 0.0
    %393 = vadd.xlane.f32.xlu0 %v392
    %v394 = vpop.xlane.xlu0 %393
    %v395 = vsel %vm56, %v387, 0.0
    %396 = vadd.xlane.f32.xlu0 %v395
    %v397 = vpop.xlane.xlu0 %396
    %v398 = vsel %vm56, %v389, 0.0
    %399 = vadd.xlane.f32.xlu0 %v398
    %v400 = vpop.xlane.xlu0 %399
    %v401 = vsel %vm56, %v391, 0.0
    %402 = vadd.xlane.f32.xlu0 %v401
    %v403 = vpop.xlane.xlu0 %402
    %v404 = vrcp.pop %v394
    %v405 = vmul.f32 %v385, %v404
    %v406 = vrcp.pop %v397
    %v407 = vmul.f32 %v387, %v406
    %v408 = vrcp.pop %v400
    %v409 = vmul.f32 %v389, %v408
    %v410 = vrcp.pop %v403
    %v411 = vmul.f32 %v391, %v410
    %v412 = vadd.f32 %v405, %v34
    %v413 = vadd.f32 %v407, %v35
    %v414 = vadd.f32 %v409, %v36
    %v415 = vadd.f32 %v411, %v37
    %416 = vrot.lane.b32.xlu0 %v237, 64
    %v417 = vpop.permute.xlu0 %416
    %418 = vrot.lane.b32.xlu0 %v242, 64
    %v419 = vpop.permute.xlu0 %418
    %420 = vrot.lane.b32.xlu0 %v247, 64
    %v421 = vpop.permute.xlu0 %420
    %422 = vrot.lane.b32.xlu0 %v252, 64
    %v423 = vpop.permute.xlu0 %422
    %v429 = vsel %vm56, %v405, 0
    %v432 = vsel %vm56, %v407, 0
    %v435 = vsel %vm56, %v409, 0
    %v438 = vsel %vm56, %v411, 0
    %440 = vmatprep.subr.mxu0 0.0
    %441 = vmatpush1.msra.mxu0 0.0
    %442 = vmatprep.subr.mxu0 0.0
    %443 = vmatpush1.msra.mxu0 0.0
    %444 = vmatprep.subr.mxu0 0.0
    %445 = vmatpush1.msra.mxu0 0.0
    %446 = vmatprep.subr.mxu0 0.0
    %447 = vmatpush1.msra.mxu0 0.0
    %448 = vmatprep.subr.mxu0 0.0
    %449 = vmatpush1.msra.mxu0 0.0
    %450 = vmatprep.subr.mxu0 0.0
    %451 = vmatpush1.msra.mxu0 0.0
    %452 = vmatprep.subr.mxu0 0.0
    %453 = vmatpush1.msra.mxu0 0.0
    %454 = vmatprep.subr.mxu0 0.0
    %455 = vmatpush1.msra.mxu0 0.0
    %456 = vmatprep.subr.mxu0 0.0
    %457 = vmatpush1.msra.mxu0 0.0
    %458 = vmatprep.subr.mxu0 0.0
    %459 = vmatpush1.msra.mxu0 0.0
    %460 = vmatprep.subr.mxu0 0.0
    %461 = vmatpush1.msra.mxu0 0.0
    %462 = vmatprep.subr.mxu0 0.0
    %463 = vmatpush1.msra.mxu0 0.0
    %464 = vmatprep.subr.mxu0 0.0
    %465 = vmatpush1.msra.mxu0 %v423
    %466 = vmatprep.subr.mxu0 0.0
    %467 = vmatpush1.msra.mxu0 %v421
    %468 = vmatprep.subr.mxu0 0.0
    %469 = vmatpush1.msra.mxu0 %v419
    %470 = vmatprep.subr.mxu0 0.0
    %471 = vmatpush1.msra.mxu0 %v417
    %472 = vmatprep.subr.mxu0 0.0
    %473 = vmatpush2.msra.mxu0 0.0
    %474 = vmatprep.subr.mxu0 0.0
    %475 = vmatpush2.msra.mxu0 0.0
    %476 = vmatprep.subr.mxu0 0.0
    %477 = vmatpush2.msra.mxu0 0.0
    %478 = vmatprep.subr.mxu0 0.0
    %479 = vmatpush2.msra.mxu0 0.0
    %480 = vmatprep.subr.mxu0 0.0
    %481 = vmatpush2.msra.mxu0 0.0
    %482 = vmatprep.subr.mxu0 0.0
    %483 = vmatpush2.msra.mxu0 0.0
    %484 = vmatprep.subr.mxu0 0.0
    %485 = vmatpush2.msra.mxu0 0.0
    %486 = vmatprep.subr.mxu0 0.0
    %487 = vmatpush2.msra.mxu0 0.0
    %488 = vmatprep.subr.mxu0 0.0
    %489 = vmatpush2.msra.mxu0 0.0
    %490 = vmatprep.subr.mxu0 0.0
    %491 = vmatpush2.msra.mxu0 0.0
    %492 = vmatprep.subr.mxu0 0.0
    %493 = vmatpush2.msra.mxu0 0.0
    %494 = vmatprep.subr.mxu0 0.0
    %495 = vmatpush2.msra.mxu0 0.0
    %496 = vmatprep.subr.mxu0 0.0
    %497 = vmatpush2.msra.mxu0 0.0
    %498 = vmatprep.subr.mxu0 0.0
    %499 = vmatpush2.msra.mxu0 0.0
    %500 = vmatprep.subr.mxu0 0.0
    %501 = vmatpush2.msra.mxu0 0.0
    %502 = vmatprep.subr.mxu0 0.0
    %503 = vmatpush2.msra.mxu0 0.0
    %504 = vmatprep.mubr.f32.mxu0 0.0
    %505 = vmatmul.mubr.f32.gmra.mxu0 %v429
    %v506 = vpop.f32.mrf.mxu0
    %v507 = vadd.f32 0.0, %v506
    %v508 = vpop.f32.mrf.mxu0
    %509 = vmatprep.mubr.f32.mxu0 0.0
    %510 = vmatmul.mubr.f32.gmra.mxu0 %v432
    %v511 = vpop.f32.mrf.mxu0
    %v512 = vadd.f32 0.0, %v511
    %v513 = vpop.f32.mrf.mxu0
    %514 = vmatprep.mubr.f32.mxu0 0.0
    %515 = vmatmul.mubr.f32.gmra.mxu0 %v435
    %v516 = vpop.f32.mrf.mxu0
    %v517 = vadd.f32 0.0, %v516
    %v518 = vpop.f32.mrf.mxu0
    %519 = vmatprep.mubr.f32.mxu0 0.0
    %520 = vmatmul.mubr.f32.gmra.mxu0 %v438
    %v521 = vpop.f32.mrf.mxu0
    %v522 = vadd.f32 0.0, %v521
    %v523 = vpop.f32.mrf.mxu0
    %524 = vdwg.mxu0
    %v525 = vlaneseq
    %v526 = vshrl.u32 %v525, 7
    %v527 = vsub.s32 0, %v526
    %v528 = vrot.slane %v51, %v527
    %529 = vmatprep.subr.mxu0 0.0
    %530 = vmatpush1.msra.mxu0 0.0
    %531 = vmatprep.subr.mxu0 0.0
    %532 = vmatpush1.msra.mxu0 0.0
    %533 = vmatprep.subr.mxu0 0.0
    %534 = vmatpush1.msra.mxu0 0.0
    %535 = vmatprep.subr.mxu0 0.0
    %536 = vmatpush1.msra.mxu0 0.0
    %537 = vmatprep.subr.mxu0 0.0
    %538 = vmatpush1.msra.mxu0 0.0
    %539 = vmatprep.subr.mxu0 0.0
    %540 = vmatpush1.msra.mxu0 0.0
    %541 = vmatprep.subr.mxu0 0.0
    %542 = vmatpush1.msra.mxu0 0.0
    %543 = vmatprep.subr.mxu0 0.0
    %544 = vmatpush1.msra.mxu0 0.0
    %545 = vmatprep.subr.mxu0 0.0
    %546 = vmatpush1.msra.mxu0 0.0
    %547 = vmatprep.subr.mxu0 0.0
    %548 = vmatpush1.msra.mxu0 0.0
    %549 = vmatprep.subr.mxu0 0.0
    %550 = vmatpush1.msra.mxu0 0.0
    %551 = vmatprep.subr.mxu0 0.0
    %552 = vmatpush1.msra.mxu0 0.0
    %553 = vmatprep.subr.mxu0 0.0
    %554 = vmatpush1.msra.mxu0 %v522
    %555 = vmatprep.subr.mxu0 0.0
    %556 = vmatpush1.msra.mxu0 %v517
    %557 = vmatprep.subr.mxu0 0.0
    %558 = vmatpush1.msra.mxu0 %v512
    %559 = vmatprep.subr.mxu0 0.0
    %560 = vmatpush1.msra.mxu0 %v507
    %561 = vmatprep.subr.mxu0 0.0
    %562 = vmatpush2.msra.mxu0 0.0
    %563 = vmatprep.subr.mxu0 0.0
    %564 = vmatpush2.msra.mxu0 0.0
    %565 = vmatprep.subr.mxu0 0.0
    %566 = vmatpush2.msra.mxu0 0.0
    %567 = vmatprep.subr.mxu0 0.0
    %568 = vmatpush2.msra.mxu0 0.0
    %569 = vmatprep.subr.mxu0 0.0
    %570 = vmatpush2.msra.mxu0 0.0
    %571 = vmatprep.subr.mxu0 0.0
    %572 = vmatpush2.msra.mxu0 0.0
    %573 = vmatprep.subr.mxu0 0.0
    %574 = vmatpush2.msra.mxu0 0.0
    %575 = vmatprep.subr.mxu0 0.0
    %576 = vmatpush2.msra.mxu0 0.0
    %577 = vmatprep.subr.mxu0 0.0
    %578 = vmatpush2.msra.mxu0 0.0
    %579 = vmatprep.subr.mxu0 0.0
    %580 = vmatpush2.msra.mxu0 0.0
    %581 = vmatprep.subr.mxu0 0.0
    %582 = vmatpush2.msra.mxu0 0.0
    %583 = vmatprep.subr.mxu0 0.0
    %584 = vmatpush2.msra.mxu0 0.0
    %585 = vmatprep.subr.mxu0 0.0
    %586 = vmatpush2.msra.mxu0 0.0
    %587 = vmatprep.subr.mxu0 0.0
    %588 = vmatpush2.msra.mxu0 0.0
    %589 = vmatprep.subr.mxu0 0.0
    %590 = vmatpush2.msra.mxu0 0.0
    %591 = vmatprep.subr.mxu0 0.0
    %592 = vmatpush2.msra.mxu0 0.0
    %593 = vmatprep.mubr.f32.mxu0 0.0
    %594 = vmatmul.mubr.f32.gmra.mxu0 %v58
    %v595 = vpop.f32.mrf.mxu0
    %v596 = vadd.f32 %v528, %v595
    %v597 = vpop.f32.mrf.mxu0
    %598 = vmatprep.mubr.f32.mxu0 0.0
    %599 = vmatmul.mubr.f32.gmra.mxu0 %v61
    %v600 = vpop.f32.mrf.mxu0
    %v601 = vadd.f32 %v528, %v600
    %v602 = vpop.f32.mrf.mxu0
    %603 = vmatprep.mubr.f32.mxu0 0.0
    %604 = vmatmul.mubr.f32.gmra.mxu0 %v64
    %v605 = vpop.f32.mrf.mxu0
    %v606 = vadd.f32 %v528, %v605
    %v607 = vpop.f32.mrf.mxu0
    %608 = vmatprep.mubr.f32.mxu0 0.0
    %609 = vmatmul.mubr.f32.gmra.mxu0 %v67
    %v610 = vpop.f32.mrf.mxu0
    %v611 = vadd.f32 %v528, %v610
    %v612 = vpop.f32.mrf.mxu0
    %613 = vdwg.mxu0
    %v614 = vsel %vm56, %v596, 0.0
    %615 = vadd.xlane.f32.xlu0 %v614
    %v616 = vpop.xlane.xlu0 %615
    %v617 = vsel %vm56, %v601, 0.0
    %618 = vadd.xlane.f32.xlu0 %v617
    %v619 = vpop.xlane.xlu0 %618
    %v620 = vsel %vm56, %v606, 0.0
    %621 = vadd.xlane.f32.xlu0 %v620
    %v622 = vpop.xlane.xlu0 %621
    %v623 = vsel %vm56, %v611, 0.0
    %624 = vadd.xlane.f32.xlu0 %v623
    %v625 = vpop.xlane.xlu0 %624
    %v626 = vrcp.pop 32.0
    %v627 = vmul.f32 %v616, %v626
    %v628 = vmul.f32 %v619, %v626
    %v629 = vmul.f32 %v622, %v626
    %v630 = vmul.f32 %v625, %v626
    %v631 = vmul.f32 %v596, %v596
    %v632 = vmul.f32 %v601, %v601
    %v633 = vmul.f32 %v606, %v606
    %v634 = vmul.f32 %v611, %v611
    %v635 = vsel %vm56, %v631, 0.0
    %636 = vadd.xlane.f32.xlu0 %v635
    %v637 = vpop.xlane.xlu0 %636
    %v638 = vsel %vm56, %v632, 0.0
    %639 = vadd.xlane.f32.xlu0 %v638
    %v640 = vpop.xlane.xlu0 %639
    %v641 = vsel %vm56, %v633, 0.0
    %642 = vadd.xlane.f32.xlu0 %v641
    %v643 = vpop.xlane.xlu0 %642
    %v644 = vsel %vm56, %v634, 0.0
    %645 = vadd.xlane.f32.xlu0 %v644
    %v646 = vpop.xlane.xlu0 %645
    %v647 = vmul.f32 %v637, %v626
    %v648 = vmul.f32 %v640, %v626
    %v649 = vmul.f32 %v643, %v626
    %v650 = vmul.f32 %v646, %v626
    %v651 = vsub.f32 %v596, %v627
    %v652 = vsub.f32 %v601, %v628
    %v653 = vsub.f32 %v606, %v629
    %v654 = vsub.f32 %v611, %v630
    %v655 = vmul.f32 %v627, %v627
    %v656 = vmul.f32 %v628, %v628
    %v657 = vmul.f32 %v629, %v629
    %v658 = vmul.f32 %v630, %v630
    %v659 = vsub.f32 %v647, %v655
    %v660 = vsub.f32 %v648, %v656
    %v661 = vsub.f32 %v649, %v657
    %v662 = vsub.f32 %v650, %v658
    %v663 = vadd.f32 %v659, 1e-05
    %v664 = vadd.f32 %v660, 1e-05
    %v665 = vadd.f32 %v661, 1e-05
    %v666 = vadd.f32 %v662, 1e-05
    %v667 = vrsqrt.pop %v663
    %v668 = vrsqrt.pop %v664
    %v669 = vrsqrt.pop %v665
    %v670 = vrsqrt.pop %v666
    %v671 = vmul.f32 %v651, %v667
    %v672 = vmul.f32 %v652, %v668
    %v673 = vmul.f32 %v653, %v669
    %v674 = vmul.f32 %v654, %v670
    %v675 = vlaneseq
    %v676 = vshrl.u32 %v675, 7
    %v677 = vsub.s32 0, %v676
    %v678 = vrot.slane %v52, %v677
    %v679 = vmul.f32 %v671, %v678
    %v680 = vmul.f32 %v672, %v678
    %v681 = vmul.f32 %v673, %v678
    %v682 = vmul.f32 %v674, %v678
    %v683 = vlaneseq
    %v684 = vshrl.u32 %v683, 7
    %v685 = vsub.s32 0, %v684
    %v686 = vrot.slane %v53, %v685
    %v687 = vadd.f32 %v679, %v686
    %v688 = vadd.f32 %v680, %v686
    %v689 = vadd.f32 %v681, %v686
    %v690 = vadd.f32 %v682, %v686
    %v691 = vadd.f32 %v687, %v38
    %v692 = vadd.f32 %v688, %v39
    %v693 = vadd.f32 %v689, %v40
    %v694 = vadd.f32 %v690, %v41
    %695 = vmatprep.subr.mxu0 0.0
    %696 = vmatpush1.msra.mxu0 0.0
    %697 = vmatprep.subr.mxu0 0.0
    %698 = vmatpush1.msra.mxu0 0.0
    %699 = vmatprep.subr.mxu0 0.0
    %700 = vmatpush1.msra.mxu0 0.0
    %701 = vmatprep.subr.mxu0 0.0
    %702 = vmatpush1.msra.mxu0 0.0
    %703 = vmatprep.subr.mxu0 0.0
    %704 = vmatpush1.msra.mxu0 0.0
    %705 = vmatprep.subr.mxu0 0.0
    %706 = vmatpush1.msra.mxu0 0.0
    %707 = vmatprep.subr.mxu0 0.0
    %708 = vmatpush1.msra.mxu0 0.0
    %709 = vmatprep.subr.mxu0 0.0
    %710 = vmatpush1.msra.mxu0 0.0
    %711 = vmatprep.subr.mxu0 0.0
    %712 = vmatpush1.msra.mxu0 0.0
    %713 = vmatprep.subr.mxu0 0.0
    %714 = vmatpush1.msra.mxu0 0.0
    %715 = vmatprep.subr.mxu0 0.0
    %716 = vmatpush1.msra.mxu0 0.0
    %717 = vmatprep.subr.mxu0 0.0
    %718 = vmatpush1.msra.mxu0 0.0
    %719 = vmatprep.subr.mxu0 0.0
    %720 = vmatpush1.msra.mxu0 %v694
    %721 = vmatprep.subr.mxu0 0.0
    %722 = vmatpush1.msra.mxu0 %v693
    %723 = vmatprep.subr.mxu0 0.0
    %724 = vmatpush1.msra.mxu0 %v692
    %725 = vmatprep.subr.mxu0 0.0
    %726 = vmatpush1.msra.mxu0 %v691
    %727 = vmatprep.subr.mxu0 0.0
    %728 = vmatpush2.msra.mxu0 0.0
    %729 = vmatprep.subr.mxu0 0.0
    %730 = vmatpush2.msra.mxu0 0.0
    %731 = vmatprep.subr.mxu0 0.0
    %732 = vmatpush2.msra.mxu0 0.0
    %733 = vmatprep.subr.mxu0 0.0
    %734 = vmatpush2.msra.mxu0 0.0
    %735 = vmatprep.subr.mxu0 0.0
    %736 = vmatpush2.msra.mxu0 0.0
    %737 = vmatprep.subr.mxu0 0.0
    %738 = vmatpush2.msra.mxu0 0.0
    %739 = vmatprep.subr.mxu0 0.0
    %740 = vmatpush2.msra.mxu0 0.0
    %741 = vmatprep.subr.mxu0 0.0
    %742 = vmatpush2.msra.mxu0 0.0
    %743 = vmatprep.subr.mxu0 0.0
    %744 = vmatpush2.msra.mxu0 0.0
    %745 = vmatprep.subr.mxu0 0.0
    %746 = vmatpush2.msra.mxu0 0.0
    %747 = vmatprep.subr.mxu0 0.0
    %748 = vmatpush2.msra.mxu0 0.0
    %749 = vmatprep.subr.mxu0 0.0
    %750 = vmatpush2.msra.mxu0 0.0
    %751 = vmatprep.subr.mxu0 0.0
    %752 = vmatpush2.msra.mxu0 0.0
    %753 = vmatprep.subr.mxu0 0.0
    %754 = vmatpush2.msra.mxu0 0.0
    %755 = vmatprep.subr.mxu0 0.0
    %756 = vmatpush2.msra.mxu0 0.0
    %757 = vmatprep.subr.mxu0 0.0
    %758 = vmatpush2.msra.mxu0 0.0
    %759 = vmatprep.mubr.f32.mxu0 0.0
    %760 = vmatmul.mubr.f32.gmra.mxu0 %v58
    %v761 = vpop.f32.mrf.mxu0
    %v762 = vadd.f32 0.0, %v761
    %v763 = vpop.f32.mrf.mxu0
    %764 = vmatprep.mubr.f32.mxu0 0.0
    %765 = vmatmul.mubr.f32.gmra.mxu0 %v61
    %v766 = vpop.f32.mrf.mxu0
    %v767 = vadd.f32 0.0, %v766
    %v768 = vpop.f32.mrf.mxu0
    %769 = vmatprep.mubr.f32.mxu0 0.0
    %770 = vmatmul.mubr.f32.gmra.mxu0 %v64
    %v771 = vpop.f32.mrf.mxu0
    %v772 = vadd.f32 0.0, %v771
    %v773 = vpop.f32.mrf.mxu0
    %774 = vmatprep.mubr.f32.mxu0 0.0
    %775 = vmatmul.mubr.f32.gmra.mxu0 %v67
    %v776 = vpop.f32.mrf.mxu0
    %v777 = vadd.f32 0.0, %v776
    %v778 = vpop.f32.mrf.mxu0
    %779 = vdwg.mxu0
    %v780 = vlaneseq
    %v781 = vshrl.u32 %v780, 7
    %v782 = vsub.s32 0, %v781
    %v783 = vrot.slane %v54, %v782
    %788 = vrot.lane.b32.xlu0 %v42, 32
    %v789 = vpop.permute.xlu0 %788
    %790 = vrot.lane.b32.xlu0 %v43, 32
    %v791 = vpop.permute.xlu0 %790
    %792 = vrot.lane.b32.xlu0 %v44, 32
    %v793 = vpop.permute.xlu0 %792
    %794 = vrot.lane.b32.xlu0 %v45, 32
    %v795 = vpop.permute.xlu0 %794
    %v801 = vsel %vm56, %v762, 0
    %v804 = vsel %vm56, %v767, 0
    %v807 = vsel %vm56, %v772, 0
    %v810 = vsel %vm56, %v777, 0
    %812 = vmatprep.subr.mxu0 0.0
    %813 = vmatpush1.msra.mxu0 0.0
    %814 = vmatprep.subr.mxu0 0.0
    %815 = vmatpush1.msra.mxu0 0.0
    %816 = vmatprep.subr.mxu0 0.0
    %817 = vmatpush1.msra.mxu0 0.0
    %818 = vmatprep.subr.mxu0 0.0
    %819 = vmatpush1.msra.mxu0 0.0
    %820 = vmatprep.subr.mxu0 0.0
    %821 = vmatpush1.msra.mxu0 0.0
    %822 = vmatprep.subr.mxu0 0.0
    %823 = vmatpush1.msra.mxu0 0.0
    %824 = vmatprep.subr.mxu0 0.0
    %825 = vmatpush1.msra.mxu0 0.0
    %826 = vmatprep.subr.mxu0 0.0
    %827 = vmatpush1.msra.mxu0 0.0
    %828 = vmatprep.subr.mxu0 0.0
    %829 = vmatpush1.msra.mxu0 0.0
    %830 = vmatprep.subr.mxu0 0.0
    %831 = vmatpush1.msra.mxu0 0.0
    %832 = vmatprep.subr.mxu0 0.0
    %833 = vmatpush1.msra.mxu0 0.0
    %834 = vmatprep.subr.mxu0 0.0
    %835 = vmatpush1.msra.mxu0 0.0
    %836 = vmatprep.subr.mxu0 0.0
    %837 = vmatpush1.msra.mxu0 %v795
    %838 = vmatprep.subr.mxu0 0.0
    %839 = vmatpush1.msra.mxu0 %v793
    %840 = vmatprep.subr.mxu0 0.0
    %841 = vmatpush1.msra.mxu0 %v791
    %842 = vmatprep.subr.mxu0 0.0
    %843 = vmatpush1.msra.mxu0 %v789
    %844 = vmatprep.subr.mxu0 0.0
    %845 = vmatpush2.msra.mxu0 0.0
    %846 = vmatprep.subr.mxu0 0.0
    %847 = vmatpush2.msra.mxu0 0.0
    %848 = vmatprep.subr.mxu0 0.0
    %849 = vmatpush2.msra.mxu0 0.0
    %850 = vmatprep.subr.mxu0 0.0
    %851 = vmatpush2.msra.mxu0 0.0
    %852 = vmatprep.subr.mxu0 0.0
    %853 = vmatpush2.msra.mxu0 0.0
    %854 = vmatprep.subr.mxu0 0.0
    %855 = vmatpush2.msra.mxu0 0.0
    %856 = vmatprep.subr.mxu0 0.0
    %857 = vmatpush2.msra.mxu0 0.0
    %858 = vmatprep.subr.mxu0 0.0
    %859 = vmatpush2.msra.mxu0 0.0
    %860 = vmatprep.subr.mxu0 0.0
    %861 = vmatpush2.msra.mxu0 0.0
    %862 = vmatprep.subr.mxu0 0.0
    %863 = vmatpush2.msra.mxu0 0.0
    %864 = vmatprep.subr.mxu0 0.0
    %865 = vmatpush2.msra.mxu0 0.0
    %866 = vmatprep.subr.mxu0 0.0
    %867 = vmatpush2.msra.mxu0 0.0
    %868 = vmatprep.subr.mxu0 0.0
    %869 = vmatpush2.msra.mxu0 0.0
    %870 = vmatprep.subr.mxu0 0.0
    %871 = vmatpush2.msra.mxu0 0.0
    %872 = vmatprep.subr.mxu0 0.0
    %873 = vmatpush2.msra.mxu0 0.0
    %874 = vmatprep.subr.mxu0 0.0
    %875 = vmatpush2.msra.mxu0 0.0
    %876 = vmatprep.mubr.f32.mxu0 0.0
    %877 = vmatmul.mubr.f32.gmra.mxu0 %v801
    %v878 = vpop.f32.mrf.mxu0
    %v879 = vadd.f32 %v783, %v878
    %v880 = vpop.f32.mrf.mxu0
    %881 = vmatprep.mubr.f32.mxu0 0.0
    %882 = vmatmul.mubr.f32.gmra.mxu0 %v804
    %v883 = vpop.f32.mrf.mxu0
    %v884 = vadd.f32 %v783, %v883
    %v885 = vpop.f32.mrf.mxu0
    %886 = vmatprep.mubr.f32.mxu0 0.0
    %887 = vmatmul.mubr.f32.gmra.mxu0 %v807
    %v888 = vpop.f32.mrf.mxu0
    %v889 = vadd.f32 %v783, %v888
    %v890 = vpop.f32.mrf.mxu0
    %891 = vmatprep.mubr.f32.mxu0 0.0
    %892 = vmatmul.mubr.f32.gmra.mxu0 %v810
    %v893 = vpop.f32.mrf.mxu0
    %v894 = vadd.f32 %v783, %v893
    %v895 = vpop.f32.mrf.mxu0
    %896 = vdwg.mxu0
    %v897 = vmax.f32 %v879, 0.0
    %v898 = vmax.f32 %v884, 0.0
    %v899 = vmax.f32 %v889, 0.0
    %v900 = vmax.f32 %v894, 0.0
    %901 = vmatprep.subr.mxu0 0.0
    %902 = vmatpush1.msra.mxu0 0.0
    %903 = vmatprep.subr.mxu0 0.0
    %904 = vmatpush1.msra.mxu0 0.0
    %905 = vmatprep.subr.mxu0 0.0
    %906 = vmatpush1.msra.mxu0 0.0
    %907 = vmatprep.subr.mxu0 0.0
    %908 = vmatpush1.msra.mxu0 0.0
    %909 = vmatprep.subr.mxu0 0.0
    %910 = vmatpush1.msra.mxu0 0.0
    %911 = vmatprep.subr.mxu0 0.0
    %912 = vmatpush1.msra.mxu0 0.0
    %913 = vmatprep.subr.mxu0 0.0
    %914 = vmatpush1.msra.mxu0 0.0
    %915 = vmatprep.subr.mxu0 0.0
    %916 = vmatpush1.msra.mxu0 0.0
    %917 = vmatprep.subr.mxu0 0.0
    %918 = vmatpush1.msra.mxu0 0.0
    %919 = vmatprep.subr.mxu0 0.0
    %920 = vmatpush1.msra.mxu0 0.0
    %921 = vmatprep.subr.mxu0 0.0
    %922 = vmatpush1.msra.mxu0 0.0
    %923 = vmatprep.subr.mxu0 0.0
    %924 = vmatpush1.msra.mxu0 0.0
    %925 = vmatprep.subr.mxu0 0.0
    %926 = vmatpush1.msra.mxu0 %v900
    %927 = vmatprep.subr.mxu0 0.0
    %928 = vmatpush1.msra.mxu0 %v899
    %929 = vmatprep.subr.mxu0 0.0
    %930 = vmatpush1.msra.mxu0 %v898
    %931 = vmatprep.subr.mxu0 0.0
    %932 = vmatpush1.msra.mxu0 %v897
    %933 = vmatprep.subr.mxu0 0.0
    %934 = vmatpush2.msra.mxu0 0.0
    %935 = vmatprep.subr.mxu0 0.0
    %936 = vmatpush2.msra.mxu0 0.0
    %937 = vmatprep.subr.mxu0 0.0
    %938 = vmatpush2.msra.mxu0 0.0
    %939 = vmatprep.subr.mxu0 0.0
    %940 = vmatpush2.msra.mxu0 0.0
    %941 = vmatprep.subr.mxu0 0.0
    %942 = vmatpush2.msra.mxu0 0.0
    %943 = vmatprep.subr.mxu0 0.0
    %944 = vmatpush2.msra.mxu0 0.0
    %945 = vmatprep.subr.mxu0 0.0
    %946 = vmatpush2.msra.mxu0 0.0
    %947 = vmatprep.subr.mxu0 0.0
    %948 = vmatpush2.msra.mxu0 0.0
    %949 = vmatprep.subr.mxu0 0.0
    %950 = vmatpush2.msra.mxu0 0.0
    %951 = vmatprep.subr.mxu0 0.0
    %952 = vmatpush2.msra.mxu0 0.0
    %953 = vmatprep.subr.mxu0 0.0
    %954 = vmatpush2.msra.mxu0 0.0
    %955 = vmatprep.subr.mxu0 0.0
    %956 = vmatpush2.msra.mxu0 0.0
    %957 = vmatprep.subr.mxu0 0.0
    %958 = vmatpush2.msra.mxu0 0.0
    %959 = vmatprep.subr.mxu0 0.0
    %960 = vmatpush2.msra.mxu0 0.0
    %961 = vmatprep.subr.mxu0 0.0
    %962 = vmatpush2.msra.mxu0 0.0
    %963 = vmatprep.subr.mxu0 0.0
    %964 = vmatpush2.msra.mxu0 0.0
    %965 = vmatprep.mubr.f32.mxu0 0.0
    %966 = vmatmul.mubr.f32.gmra.mxu0 %v58
    %v967 = vpop.f32.mrf.mxu0
    %v968 = vadd.f32 0.0, %v967
    %v969 = vpop.f32.mrf.mxu0
    %970 = vmatprep.mubr.f32.mxu0 0.0
    %971 = vmatmul.mubr.f32.gmra.mxu0 %v61
    %v972 = vpop.f32.mrf.mxu0
    %v973 = vadd.f32 0.0, %v972
    %v974 = vpop.f32.mrf.mxu0
    %975 = vmatprep.mubr.f32.mxu0 0.0
    %976 = vmatmul.mubr.f32.gmra.mxu0 %v64
    %v977 = vpop.f32.mrf.mxu0
    %v978 = vadd.f32 0.0, %v977
    %v979 = vpop.f32.mrf.mxu0
    %980 = vmatprep.mubr.f32.mxu0 0.0
    %981 = vmatmul.mubr.f32.gmra.mxu0 %v67
    %v982 = vpop.f32.mrf.mxu0
    %v983 = vadd.f32 0.0, %v982
    %v984 = vpop.f32.mrf.mxu0
    %985 = vdwg.mxu0
    %v986 = vlaneseq
    %v987 = vshrl.u32 %v986, 7
    %v988 = vsub.s32 0, %v987
    %v989 = vrot.slane %v55, %v988
    %v991 = vsel %vm56, %v968, 0
    %v994 = vsel %vm56, %v973, 0
    %v997 = vsel %vm56, %v978, 0
    %v1000 = vsel %vm56, %v983, 0
    %1002 = vmatprep.subr.mxu0 0.0
    %1003 = vmatpush1.msra.mxu0 0.0
    %1004 = vmatprep.subr.mxu0 0.0
    %1005 = vmatpush1.msra.mxu0 0.0
    %1006 = vmatprep.subr.mxu0 0.0
    %1007 = vmatpush1.msra.mxu0 0.0
    %1008 = vmatprep.subr.mxu0 0.0
    %1009 = vmatpush1.msra.mxu0 0.0
    %1010 = vmatprep.subr.mxu0 0.0
    %1011 = vmatpush1.msra.mxu0 0.0
    %1012 = vmatprep.subr.mxu0 0.0
    %1013 = vmatpush1.msra.mxu0 0.0
    %1014 = vmatprep.subr.mxu0 0.0
    %1015 = vmatpush1.msra.mxu0 0.0
    %1016 = vmatprep.subr.mxu0 0.0
    %1017 = vmatpush1.msra.mxu0 0.0
    %1018 = vmatprep.subr.mxu0 0.0
    %1019 = vmatpush1.msra.mxu0 0.0
    %1020 = vmatprep.subr.mxu0 0.0
    %1021 = vmatpush1.msra.mxu0 0.0
    %1022 = vmatprep.subr.mxu0 0.0
    %1023 = vmatpush1.msra.mxu0 0.0
    %1024 = vmatprep.subr.mxu0 0.0
    %1025 = vmatpush1.msra.mxu0 0.0
    %1026 = vmatprep.subr.mxu0 0.0
    %1027 = vmatpush1.msra.mxu0 %v49
    %1028 = vmatprep.subr.mxu0 0.0
    %1029 = vmatpush1.msra.mxu0 %v48
    %1030 = vmatprep.subr.mxu0 0.0
    %1031 = vmatpush1.msra.mxu0 %v47
    %1032 = vmatprep.subr.mxu0 0.0
    %1033 = vmatpush1.msra.mxu0 %v46
    %1034 = vmatprep.subr.mxu0 0.0
    %1035 = vmatpush2.msra.mxu0 0.0
    %1036 = vmatprep.subr.mxu0 0.0
    %1037 = vmatpush2.msra.mxu0 0.0
    %1038 = vmatprep.subr.mxu0 0.0
    %1039 = vmatpush2.msra.mxu0 0.0
    %1040 = vmatprep.subr.mxu0 0.0
    %1041 = vmatpush2.msra.mxu0 0.0
    %1042 = vmatprep.subr.mxu0 0.0
    %1043 = vmatpush2.msra.mxu0 0.0
    %1044 = vmatprep.subr.mxu0 0.0
    %1045 = vmatpush2.msra.mxu0 0.0
    %1046 = vmatprep.subr.mxu0 0.0
    %1047 = vmatpush2.msra.mxu0 0.0
    %1048 = vmatprep.subr.mxu0 0.0
    %1049 = vmatpush2.msra.mxu0 0.0
    %1050 = vmatprep.subr.mxu0 0.0
    %1051 = vmatpush2.msra.mxu0 0.0
    %1052 = vmatprep.subr.mxu0 0.0
    %1053 = vmatpush2.msra.mxu0 0.0
    %1054 = vmatprep.subr.mxu0 0.0
    %1055 = vmatpush2.msra.mxu0 0.0
    %1056 = vmatprep.subr.mxu0 0.0
    %1057 = vmatpush2.msra.mxu0 0.0
    %1058 = vmatprep.subr.mxu0 0.0
    %1059 = vmatpush2.msra.mxu0 0.0
    %1060 = vmatprep.subr.mxu0 0.0
    %1061 = vmatpush2.msra.mxu0 0.0
    %1062 = vmatprep.subr.mxu0 0.0
    %1063 = vmatpush2.msra.mxu0 0.0
    %1064 = vmatprep.subr.mxu0 0.0
    %1065 = vmatpush2.msra.mxu0 0.0
    %1066 = vmatprep.mubr.f32.mxu0 0.0
    %1067 = vmatmul.mubr.f32.gmra.mxu0 %v991
    %v1068 = vpop.f32.mrf.mxu0
    %v1069 = vadd.f32 %v989, %v1068
    %v1070 = vpop.f32.mrf.mxu0
    %1071 = vmatprep.mubr.f32.mxu0 0.0
    %1072 = vmatmul.mubr.f32.gmra.mxu0 %v994
    %v1073 = vpop.f32.mrf.mxu0
    %v1074 = vadd.f32 %v989, %v1073
    %v1075 = vpop.f32.mrf.mxu0
    %1076 = vmatprep.mubr.f32.mxu0 0.0
    %1077 = vmatmul.mubr.f32.gmra.mxu0 %v997
    %v1078 = vpop.f32.mrf.mxu0
    %v1079 = vadd.f32 %v989, %v1078
    %v1080 = vpop.f32.mrf.mxu0
    %1081 = vmatprep.mubr.f32.mxu0 0.0
    %1082 = vmatmul.mubr.f32.gmra.mxu0 %v1000
    %v1083 = vpop.f32.mrf.mxu0
    %v1084 = vadd.f32 %v989, %v1083
    %v1085 = vpop.f32.mrf.mxu0
    %1086 = vdwg.mxu0
    %v1087 = vsel %vm56, %v1069, 0.0
    %1088 = vadd.xlane.f32.xlu0 %v1087
    %v1089 = vpop.xlane.xlu0 %1088
    %v1090 = vsel %vm56, %v1074, 0.0
    %1091 = vadd.xlane.f32.xlu0 %v1090
    %v1092 = vpop.xlane.xlu0 %1091
    %v1093 = vsel %vm56, %v1079, 0.0
    %1094 = vadd.xlane.f32.xlu0 %v1093
    %v1095 = vpop.xlane.xlu0 %1094
    %v1096 = vsel %vm56, %v1084, 0.0
    %1097 = vadd.xlane.f32.xlu0 %v1096
    %v1098 = vpop.xlane.xlu0 %1097
    %v1099 = vmul.f32 %v1089, %v626
    %v1100 = vmul.f32 %v1092, %v626
    %v1101 = vmul.f32 %v1095, %v626
    %v1102 = vmul.f32 %v1098, %v626
    %v1103 = vmul.f32 %v1069, %v1069
    %v1104 = vmul.f32 %v1074, %v1074
    %v1105 = vmul.f32 %v1079, %v1079
    %v1106 = vmul.f32 %v1084, %v1084
    %v1107 = vsel %vm56, %v1103, 0.0
    %1108 = vadd.xlane.f32.xlu0 %v1107
    %v1109 = vpop.xlane.xlu0 %1108
    %v1110 = vsel %vm56, %v1104, 0.0
    %1111 = vadd.xlane.f32.xlu0 %v1110
    %v1112 = vpop.xlane.xlu0 %1111
    %v1113 = vsel %vm56, %v1105, 0.0
    %1114 = vadd.xlane.f32.xlu0 %v1113
    %v1115 = vpop.xlane.xlu0 %1114
    %v1116 = vsel %vm56, %v1106, 0.0
    %1117 = vadd.xlane.f32.xlu0 %v1116
    %v1118 = vpop.xlane.xlu0 %1117
    %v1119 = vmul.f32 %v1109, %v626
    %v1120 = vmul.f32 %v1112, %v626
    %v1121 = vmul.f32 %v1115, %v626
    %v1122 = vmul.f32 %v1118, %v626
    %v1123 = vsub.f32 %v1069, %v1099
    %v1124 = vsub.f32 %v1074, %v1100
    %v1125 = vsub.f32 %v1079, %v1101
    %v1126 = vsub.f32 %v1084, %v1102
    %v1127 = vmul.f32 %v1099, %v1099
    %v1128 = vmul.f32 %v1100, %v1100
    %v1129 = vmul.f32 %v1101, %v1101
    %v1130 = vmul.f32 %v1102, %v1102
    %v1131 = vsub.f32 %v1119, %v1127
    %v1132 = vsub.f32 %v1120, %v1128
    %v1133 = vsub.f32 %v1121, %v1129
    %v1134 = vsub.f32 %v1122, %v1130
    %v1135 = vadd.f32 %v1131, 1e-05
    %v1136 = vadd.f32 %v1132, 1e-05
    %v1137 = vadd.f32 %v1133, 1e-05
    %v1138 = vadd.f32 %v1134, 1e-05
    %v1139 = vrsqrt.pop %v1135
    %v1140 = vrsqrt.pop %v1136
    %v1141 = vrsqrt.pop %v1137
    %v1142 = vrsqrt.pop %v1138
    %v1143 = vmul.f32 %v1123, %v1139
    %v1144 = vmul.f32 %v1124, %v1140
    %v1145 = vmul.f32 %v1125, %v1141
    %v1146 = vmul.f32 %v1126, %v1142
    %v1147 = vmul.f32 %v1143, %v678
    %v1148 = vmul.f32 %v1144, %v678
    %v1149 = vmul.f32 %v1145, %v678
    %v1150 = vmul.f32 %v1146, %v678
    %v1151 = vadd.f32 %v1147, %v686
    %v1152 = vadd.f32 %v1148, %v686
    %v1153 = vadd.f32 %v1149, %v686
    %v1154 = vadd.f32 %v1150, %v686
    %v1155 = vld [vmem:[%s4 + $0x8] sm:$0xff]
    %v1156 = vld [vmem:[%s4 + $0x20] sm:$0xff]
    %v1157 = vld [vmem:[%s4 + $0x38] sm:$0xff]
    %v1158 = vld [vmem:[%s4 + $0x50] sm:$0xff]
    %v1159 = vld [vmem:[%s5 + $0x20] sm:$0xff]
    %v1160 = vld [vmem:[%s5 + $0x28] sm:$0xff]
    %v1161 = vld [vmem:[%s5 + $0x30] sm:$0xff]
    %v1162 = vld [vmem:[%s5 + $0x38] sm:$0xff]
    %v1163 = vld [vmem:[%s7 + $0x6] sm:$0x1]
    %v1164 = vld [vmem:[%s7 + $0x7] sm:$0x1]
    %v1165 = vld [vmem:[%s7 + $0x8] sm:$0x1]
    %v1166 = vld [vmem:[%s7 + $0x9] sm:$0x1]
    %v1167 = vld [vmem:[%s7 + $0xa] sm:$0x1]
    %v1168 = vld [vmem:[%s7 + $0xb] sm:$0x1]
    %1169 = vmatprep.subr.mxu0 0.0
    %1170 = vmatpush1.msra.mxu0 0.0
    %1171 = vmatprep.subr.mxu0 0.0
    %1172 = vmatpush1.msra.mxu0 0.0
    %1173 = vmatprep.subr.mxu0 0.0
    %1174 = vmatpush1.msra.mxu0 0.0
    %1175 = vmatprep.subr.mxu0 0.0
    %1176 = vmatpush1.msra.mxu0 0.0
    %1177 = vmatprep.subr.mxu0 0.0
    %1178 = vmatpush1.msra.mxu0 0.0
    %1179 = vmatprep.subr.mxu0 0.0
    %1180 = vmatpush1.msra.mxu0 0.0
    %1181 = vmatprep.subr.mxu0 0.0
    %1182 = vmatpush1.msra.mxu0 0.0
    %1183 = vmatprep.subr.mxu0 0.0
    %1184 = vmatpush1.msra.mxu0 0.0
    %1185 = vmatprep.subr.mxu0 0.0
    %1186 = vmatpush1.msra.mxu0 0.0
    %1187 = vmatprep.subr.mxu0 0.0
    %1188 = vmatpush1.msra.mxu0 0.0
    %1189 = vmatprep.subr.mxu0 0.0
    %1190 = vmatpush1.msra.mxu0 0.0
    %1191 = vmatprep.subr.mxu0 0.0
    %1192 = vmatpush1.msra.mxu0 0.0
    %1193 = vmatprep.subr.mxu0 0.0
    %1194 = vmatpush1.msra.mxu0 %v1154
    %1195 = vmatprep.subr.mxu0 0.0
    %1196 = vmatpush1.msra.mxu0 %v1153
    %1197 = vmatprep.subr.mxu0 0.0
    %1198 = vmatpush1.msra.mxu0 %v1152
    %1199 = vmatprep.subr.mxu0 0.0
    %1200 = vmatpush1.msra.mxu0 %v1151
    %1201 = vmatprep.subr.mxu0 0.0
    %1202 = vmatpush2.msra.mxu0 0.0
    %1203 = vmatprep.subr.mxu0 0.0
    %1204 = vmatpush2.msra.mxu0 0.0
    %1205 = vmatprep.subr.mxu0 0.0
    %1206 = vmatpush2.msra.mxu0 0.0
    %1207 = vmatprep.subr.mxu0 0.0
    %1208 = vmatpush2.msra.mxu0 0.0
    %1209 = vmatprep.subr.mxu0 0.0
    %1210 = vmatpush2.msra.mxu0 0.0
    %1211 = vmatprep.subr.mxu0 0.0
    %1212 = vmatpush2.msra.mxu0 0.0
    %1213 = vmatprep.subr.mxu0 0.0
    %1214 = vmatpush2.msra.mxu0 0.0
    %1215 = vmatprep.subr.mxu0 0.0
    %1216 = vmatpush2.msra.mxu0 0.0
    %1217 = vmatprep.subr.mxu0 0.0
    %1218 = vmatpush2.msra.mxu0 0.0
    %1219 = vmatprep.subr.mxu0 0.0
    %1220 = vmatpush2.msra.mxu0 0.0
    %1221 = vmatprep.subr.mxu0 0.0
    %1222 = vmatpush2.msra.mxu0 0.0
    %1223 = vmatprep.subr.mxu0 0.0
    %1224 = vmatpush2.msra.mxu0 0.0
    %1225 = vmatprep.subr.mxu0 0.0
    %1226 = vmatpush2.msra.mxu0 0.0
    %1227 = vmatprep.subr.mxu0 0.0
    %1228 = vmatpush2.msra.mxu0 0.0
    %1229 = vmatprep.subr.mxu0 0.0
    %1230 = vmatpush2.msra.mxu0 0.0
    %1231 = vmatprep.subr.mxu0 0.0
    %1232 = vmatpush2.msra.mxu0 0.0
    %1233 = vmatprep.mubr.f32.mxu0 0.0
    %1234 = vmatmul.mubr.f32.gmra.mxu0 %v58
    %v1235 = vpop.f32.mrf.mxu0
    %v1236 = vadd.f32 0.0, %v1235
    %v1237 = vpop.f32.mrf.mxu0
    %1238 = vmatprep.mubr.f32.mxu0 0.0
    %1239 = vmatmul.mubr.f32.gmra.mxu0 %v61
    %v1240 = vpop.f32.mrf.mxu0
    %v1241 = vadd.f32 0.0, %v1240
    %v1242 = vpop.f32.mrf.mxu0
    %1243 = vmatprep.mubr.f32.mxu0 0.0
    %1244 = vmatmul.mubr.f32.gmra.mxu0 %v64
    %v1245 = vpop.f32.mrf.mxu0
    %v1246 = vadd.f32 0.0, %v1245
    %v1247 = vpop.f32.mrf.mxu0
    %1248 = vmatprep.mubr.f32.mxu0 0.0
    %1249 = vmatmul.mubr.f32.gmra.mxu0 %v67
    %v1250 = vpop.f32.mrf.mxu0
    %v1251 = vadd.f32 0.0, %v1250
    %v1252 = vpop.f32.mrf.mxu0
    %1253 = vdwg.mxu0
    %v1254 = vlaneseq
    %v1255 = vshrl.u32 %v1254, 7
    %v1256 = vsub.s32 0, %v1255
    %v1257 = vrot.slane %v1163, %v1256
    %v1259 = vsel %vm56, %v1236, 0
    %v1262 = vsel %vm56, %v1241, 0
    %v1265 = vsel %vm56, %v1246, 0
    %v1268 = vsel %vm56, %v1251, 0
    %1270 = vmatprep.subr.mxu0 0.0
    %1271 = vmatpush1.msra.mxu0 0.0
    %1272 = vmatprep.subr.mxu0 0.0
    %1273 = vmatpush1.msra.mxu0 0.0
    %1274 = vmatprep.subr.mxu0 0.0
    %1275 = vmatpush1.msra.mxu0 0.0
    %1276 = vmatprep.subr.mxu0 0.0
    %1277 = vmatpush1.msra.mxu0 0.0
    %1278 = vmatprep.subr.mxu0 0.0
    %1279 = vmatpush1.msra.mxu0 0.0
    %1280 = vmatprep.subr.mxu0 0.0
    %1281 = vmatpush1.msra.mxu0 0.0
    %1282 = vmatprep.subr.mxu0 0.0
    %1283 = vmatpush1.msra.mxu0 0.0
    %1284 = vmatprep.subr.mxu0 0.0
    %1285 = vmatpush1.msra.mxu0 0.0
    %1286 = vmatprep.subr.mxu0 0.0
    %1287 = vmatpush1.msra.mxu0 0.0
    %1288 = vmatprep.subr.mxu0 0.0
    %1289 = vmatpush1.msra.mxu0 0.0
    %1290 = vmatprep.subr.mxu0 0.0
    %1291 = vmatpush1.msra.mxu0 0.0
    %1292 = vmatprep.subr.mxu0 0.0
    %1293 = vmatpush1.msra.mxu0 0.0
    %1294 = vmatprep.subr.mxu0 0.0
    %1295 = vmatpush1.msra.mxu0 %v1158
    %1296 = vmatprep.subr.mxu0 0.0
    %1297 = vmatpush1.msra.mxu0 %v1157
    %1298 = vmatprep.subr.mxu0 0.0
    %1299 = vmatpush1.msra.mxu0 %v1156
    %1300 = vmatprep.subr.mxu0 0.0
    %1301 = vmatpush1.msra.mxu0 %v1155
    %1302 = vmatprep.subr.mxu0 0.0
    %1303 = vmatpush2.msra.mxu0 0.0
    %1304 = vmatprep.subr.mxu0 0.0
    %1305 = vmatpush2.msra.mxu0 0.0
    %1306 = vmatprep.subr.mxu0 0.0
    %1307 = vmatpush2.msra.mxu0 0.0
    %1308 = vmatprep.subr.mxu0 0.0
    %1309 = vmatpush2.msra.mxu0 0.0
    %1310 = vmatprep.subr.mxu0 0.0
    %1311 = vmatpush2.msra.mxu0 0.0
    %1312 = vmatprep.subr.mxu0 0.0
    %1313 = vmatpush2.msra.mxu0 0.0
    %1314 = vmatprep.subr.mxu0 0.0
    %1315 = vmatpush2.msra.mxu0 0.0
    %1316 = vmatprep.subr.mxu0 0.0
    %1317 = vmatpush2.msra.mxu0 0.0
    %1318 = vmatprep.subr.mxu0 0.0
    %1319 = vmatpush2.msra.mxu0 0.0
    %1320 = vmatprep.subr.mxu0 0.0
    %1321 = vmatpush2.msra.mxu0 0.0
    %1322 = vmatprep.subr.mxu0 0.0
    %1323 = vmatpush2.msra.mxu0 0.0
    %1324 = vmatprep.subr.mxu0 0.0
    %1325 = vmatpush2.msra.mxu0 0.0
    %1326 = vmatprep.subr.mxu0 0.0
    %1327 = vmatpush2.msra.mxu0 0.0
    %1328 = vmatprep.subr.mxu0 0.0
    %1329 = vmatpush2.msra.mxu0 0.0
    %1330 = vmatprep.subr.mxu0 0.0
    %1331 = vmatpush2.msra.mxu0 0.0
    %1332 = vmatprep.subr.mxu0 0.0
    %1333 = vmatpush2.msra.mxu0 0.0
    %1334 = vmatprep.mubr.f32.mxu0 0.0
    %1335 = vmatmul.mubr.f32.gmra.mxu0 %v1259
    %v1336 = vpop.f32.mrf.mxu0
    %v1337 = vadd.f32 %v1257, %v1336
    %v1338 = vpop.f32.mrf.mxu0
    %1339 = vmatprep.mubr.f32.mxu0 0.0
    %1340 = vmatmul.mubr.f32.gmra.mxu0 %v1262
    %v1341 = vpop.f32.mrf.mxu0
    %v1342 = vadd.f32 %v1257, %v1341
    %v1343 = vpop.f32.mrf.mxu0
    %1344 = vmatprep.mubr.f32.mxu0 0.0
    %1345 = vmatmul.mubr.f32.gmra.mxu0 %v1265
    %v1346 = vpop.f32.mrf.mxu0
    %v1347 = vadd.f32 %v1257, %v1346
    %v1348 = vpop.f32.mrf.mxu0
    %1349 = vmatprep.mubr.f32.mxu0 0.0
    %1350 = vmatmul.mubr.f32.gmra.mxu0 %v1268
    %v1351 = vpop.f32.mrf.mxu0
    %v1352 = vadd.f32 %v1257, %v1351
    %v1353 = vpop.f32.mrf.mxu0
    %1354 = vdwg.mxu0
    %1359 = vrot.lane.b32.xlu0 %v1337, 96
    %v1360 = vpop.permute.xlu0 %1359
    %1361 = vrot.lane.b32.xlu0 %v1342, 96
    %v1362 = vpop.permute.xlu0 %1361
    %1363 = vrot.lane.b32.xlu0 %v1347, 96
    %v1364 = vpop.permute.xlu0 %1363
    %1365 = vrot.lane.b32.xlu0 %v1352, 96
    %v1366 = vpop.permute.xlu0 %1365
    %v1367 = vsel %vm56, %v1337, 0
    %v1369 = vsel %vm56, %v1342, 0
    %v1371 = vsel %vm56, %v1347, 0
    %v1373 = vsel %vm56, %v1352, 0
    %v1375 = vsel %vm56, %v1360, 0
    %v1377 = vsel %vm56, %v1362, 0
    %v1379 = vsel %vm56, %v1364, 0
    %v1381 = vsel %vm56, %v1366, 0
    %1383 = vmatprep.subr.mxu0 0.0
    %1384 = vmatpush1.xpose.msra.mxu0 0.0
    %1385 = vmatprep.subr.mxu0 0.0
    %1386 = vmatpush1.xpose.msra.mxu0 0.0
    %1387 = vmatprep.subr.mxu0 0.0
    %1388 = vmatpush1.xpose.msra.mxu0 0.0
    %1389 = vmatprep.subr.mxu0 0.0
    %1390 = vmatpush1.xpose.msra.mxu0 0.0
    %1391 = vmatprep.subr.mxu0 0.0
    %1392 = vmatpush1.xpose.msra.mxu0 0.0
    %1393 = vmatprep.subr.mxu0 0.0
    %1394 = vmatpush1.xpose.msra.mxu0 0.0
    %1395 = vmatprep.subr.mxu0 0.0
    %1396 = vmatpush1.xpose.msra.mxu0 0.0
    %1397 = vmatprep.subr.mxu0 0.0
    %1398 = vmatpush1.xpose.msra.mxu0 0.0
    %1399 = vmatprep.subr.mxu0 0.0
    %1400 = vmatpush1.xpose.msra.mxu0 0.0
    %1401 = vmatprep.subr.mxu0 0.0
    %1402 = vmatpush1.xpose.msra.mxu0 0.0
    %1403 = vmatprep.subr.mxu0 0.0
    %1404 = vmatpush1.xpose.msra.mxu0 0.0
    %1405 = vmatprep.subr.mxu0 0.0
    %1406 = vmatpush1.xpose.msra.mxu0 0.0
    %1407 = vmatprep.subr.mxu0 0.0
    %1408 = vmatpush1.xpose.msra.mxu0 %v1381
    %1409 = vmatprep.subr.mxu0 0.0
    %1410 = vmatpush1.xpose.msra.mxu0 %v1379
    %1411 = vmatprep.subr.mxu0 0.0
    %1412 = vmatpush1.xpose.msra.mxu0 %v1377
    %1413 = vmatprep.subr.mxu0 0.0
    %1414 = vmatpush1.xpose.msra.mxu0 %v1375
    %1415 = vmatprep.subr.mxu0 0.0
    %1416 = vmatpush2.xpose.msra.mxu0 0.0
    %1417 = vmatprep.subr.mxu0 0.0
    %1418 = vmatpush2.xpose.msra.mxu0 0.0
    %1419 = vmatprep.subr.mxu0 0.0
    %1420 = vmatpush2.xpose.msra.mxu0 0.0
    %1421 = vmatprep.subr.mxu0 0.0
    %1422 = vmatpush2.xpose.msra.mxu0 0.0
    %1423 = vmatprep.subr.mxu0 0.0
    %1424 = vmatpush2.xpose.msra.mxu0 0.0
    %1425 = vmatprep.subr.mxu0 0.0
    %1426 = vmatpush2.xpose.msra.mxu0 0.0
    %1427 = vmatprep.subr.mxu0 0.0
    %1428 = vmatpush2.xpose.msra.mxu0 0.0
    %1429 = vmatprep.subr.mxu0 0.0
    %1430 = vmatpush2.xpose.msra.mxu0 0.0
    %1431 = vmatprep.subr.mxu0 0.0
    %1432 = vmatpush2.xpose.msra.mxu0 0.0
    %1433 = vmatprep.subr.mxu0 0.0
    %1434 = vmatpush2.xpose.msra.mxu0 0.0
    %1435 = vmatprep.subr.mxu0 0.0
    %1436 = vmatpush2.xpose.msra.mxu0 0.0
    %1437 = vmatprep.subr.mxu0 0.0
    %1438 = vmatpush2.xpose.msra.mxu0 0.0
    %1439 = vmatprep.subr.mxu0 0.0
    %1440 = vmatpush2.xpose.msra.mxu0 0.0
    %1441 = vmatprep.subr.mxu0 0.0
    %1442 = vmatpush2.xpose.msra.mxu0 0.0
    %1443 = vmatprep.subr.mxu0 0.0
    %1444 = vmatpush2.xpose.msra.mxu0 0.0
    %1445 = vmatprep.subr.mxu0 0.0
    %1446 = vmatpush2.xpose.msra.mxu0 0.0
    %1447 = vmatprep.mubr.f32.mxu0 0.0
    %1448 = vmatmul.mubr.f32.gmra.mxu0 %v1367
    %v1449 = vpop.f32.mrf.mxu0
    %v1450 = vadd.f32 %v412, %v1449
    %v1451 = vpop.f32.mrf.mxu0
    %1452 = vmatprep.mubr.f32.mxu0 0.0
    %1453 = vmatmul.mubr.f32.gmra.mxu0 %v1369
    %v1454 = vpop.f32.mrf.mxu0
    %v1455 = vadd.f32 %v413, %v1454
    %v1456 = vpop.f32.mrf.mxu0
    %1457 = vmatprep.mubr.f32.mxu0 0.0
    %1458 = vmatmul.mubr.f32.gmra.mxu0 %v1371
    %v1459 = vpop.f32.mrf.mxu0
    %v1460 = vadd.f32 %v414, %v1459
    %v1461 = vpop.f32.mrf.mxu0
    %1462 = vmatprep.mubr.f32.mxu0 0.0
    %1463 = vmatmul.mubr.f32.gmra.mxu0 %v1373
    %v1464 = vpop.f32.mrf.mxu0
    %v1465 = vadd.f32 %v415, %v1464
    %v1466 = vpop.f32.mrf.mxu0
    %1467 = vdwg.mxu0
    %v1468 = vsel %vm56, %v1450, -inf
    %1469 = vmax.xlane.f32.xlu0 %v1468
    %v1470 = vpop.xlane.xlu0 %1469
    %v1471 = vsel %vm56, %v1455, -inf
    %1472 = vmax.xlane.f32.xlu0 %v1471
    %v1473 = vpop.xlane.xlu0 %1472
    %v1474 = vsel %vm56, %v1460, -inf
    %1475 = vmax.xlane.f32.xlu0 %v1474
    %v1476 = vpop.xlane.xlu0 %1475
    %v1477 = vsel %vm56, %v1465, -inf
    %1478 = vmax.xlane.f32.xlu0 %v1477
    %v1479 = vpop.xlane.xlu0 %1478
    %v1480 = vsub.f32 %v1450, %v1470
    %v1481 = vsub.f32 %v1455, %v1473
    %v1482 = vsub.f32 %v1460, %v1476
    %v1483 = vsub.f32 %v1465, %v1479
    %v1484 = vmul.f32 %v1480, 1.442695
    %v1485 = vpow.pop %v1484
    %v1486 = vmul.f32 %v1481, 1.442695
    %v1487 = vpow.pop %v1486
    %v1488 = vmul.f32 %v1482, 1.442695
    %v1489 = vpow.pop %v1488
    %v1490 = vmul.f32 %v1483, 1.442695
    %v1491 = vpow.pop %v1490
    %v1492 = vsel %vm56, %v1485, 0.0
    %1493 = vadd.xlane.f32.xlu0 %v1492
    %v1494 = vpop.xlane.xlu0 %1493
    %v1495 = vsel %vm56, %v1487, 0.0
    %1496 = vadd.xlane.f32.xlu0 %v1495
    %v1497 = vpop.xlane.xlu0 %1496
    %v1498 = vsel %vm56, %v1489, 0.0
    %1499 = vadd.xlane.f32.xlu0 %v1498
    %v1500 = vpop.xlane.xlu0 %1499
    %v1501 = vsel %vm56, %v1491, 0.0
    %1502 = vadd.xlane.f32.xlu0 %v1501
    %v1503 = vpop.xlane.xlu0 %1502
    %v1504 = vrcp.pop %v1494
    %v1505 = vmul.f32 %v1485, %v1504
    %v1506 = vrcp.pop %v1497
    %v1507 = vmul.f32 %v1487, %v1506
    %v1508 = vrcp.pop %v1500
    %v1509 = vmul.f32 %v1489, %v1508
    %v1510 = vrcp.pop %v1503
    %v1511 = vmul.f32 %v1491, %v1510
    %1512 = vrot.lane.b32.xlu0 %v1337, 64
    %v1513 = vpop.permute.xlu0 %1512
    %1514 = vrot.lane.b32.xlu0 %v1342, 64
    %v1515 = vpop.permute.xlu0 %1514
    %1516 = vrot.lane.b32.xlu0 %v1347, 64
    %v1517 = vpop.permute.xlu0 %1516
    %1518 = vrot.lane.b32.xlu0 %v1352, 64
    %v1519 = vpop.permute.xlu0 %1518
    %v1525 = vsel %vm56, %v1505, 0
    %v1528 = vsel %vm56, %v1507, 0
    %v1531 = vsel %vm56, %v1509, 0
    %v1534 = vsel %vm56, %v1511, 0
    %1536 = vmatprep.subr.mxu0 0.0
    %1537 = vmatpush1.msra.mxu0 0.0
    %1538 = vmatprep.subr.mxu0 0.0
    %1539 = vmatpush1.msra.mxu0 0.0
    %1540 = vmatprep.subr.mxu0 0.0
    %1541 = vmatpush1.msra.mxu0 0.0
    %1542 = vmatprep.subr.mxu0 0.0
    %1543 = vmatpush1.msra.mxu0 0.0
    %1544 = vmatprep.subr.mxu0 0.0
    %1545 = vmatpush1.msra.mxu0 0.0
    %1546 = vmatprep.subr.mxu0 0.0
    %1547 = vmatpush1.msra.mxu0 0.0
    %1548 = vmatprep.subr.mxu0 0.0
    %1549 = vmatpush1.msra.mxu0 0.0
    %1550 = vmatprep.subr.mxu0 0.0
    %1551 = vmatpush1.msra.mxu0 0.0
    %1552 = vmatprep.subr.mxu0 0.0
    %1553 = vmatpush1.msra.mxu0 0.0
    %1554 = vmatprep.subr.mxu0 0.0
    %1555 = vmatpush1.msra.mxu0 0.0
    %1556 = vmatprep.subr.mxu0 0.0
    %1557 = vmatpush1.msra.mxu0 0.0
    %1558 = vmatprep.subr.mxu0 0.0
    %1559 = vmatpush1.msra.mxu0 0.0
    %1560 = vmatprep.subr.mxu0 0.0
    %1561 = vmatpush1.msra.mxu0 %v1519
    %1562 = vmatprep.subr.mxu0 0.0
    %1563 = vmatpush1.msra.mxu0 %v1517
    %1564 = vmatprep.subr.mxu0 0.0
    %1565 = vmatpush1.msra.mxu0 %v1515
    %1566 = vmatprep.subr.mxu0 0.0
    %1567 = vmatpush1.msra.mxu0 %v1513
    %1568 = vmatprep.subr.mxu0 0.0
    %1569 = vmatpush2.msra.mxu0 0.0
    %1570 = vmatprep.subr.mxu0 0.0
    %1571 = vmatpush2.msra.mxu0 0.0
    %1572 = vmatprep.subr.mxu0 0.0
    %1573 = vmatpush2.msra.mxu0 0.0
    %1574 = vmatprep.subr.mxu0 0.0
    %1575 = vmatpush2.msra.mxu0 0.0
    %1576 = vmatprep.subr.mxu0 0.0
    %1577 = vmatpush2.msra.mxu0 0.0
    %1578 = vmatprep.subr.mxu0 0.0
    %1579 = vmatpush2.msra.mxu0 0.0
    %1580 = vmatprep.subr.mxu0 0.0
    %1581 = vmatpush2.msra.mxu0 0.0
    %1582 = vmatprep.subr.mxu0 0.0
    %1583 = vmatpush2.msra.mxu0 0.0
    %1584 = vmatprep.subr.mxu0 0.0
    %1585 = vmatpush2.msra.mxu0 0.0
    %1586 = vmatprep.subr.mxu0 0.0
    %1587 = vmatpush2.msra.mxu0 0.0
    %1588 = vmatprep.subr.mxu0 0.0
    %1589 = vmatpush2.msra.mxu0 0.0
    %1590 = vmatprep.subr.mxu0 0.0
    %1591 = vmatpush2.msra.mxu0 0.0
    %1592 = vmatprep.subr.mxu0 0.0
    %1593 = vmatpush2.msra.mxu0 0.0
    %1594 = vmatprep.subr.mxu0 0.0
    %1595 = vmatpush2.msra.mxu0 0.0
    %1596 = vmatprep.subr.mxu0 0.0
    %1597 = vmatpush2.msra.mxu0 0.0
    %1598 = vmatprep.subr.mxu0 0.0
    %1599 = vmatpush2.msra.mxu0 0.0
    %1600 = vmatprep.mubr.f32.mxu0 0.0
    %1601 = vmatmul.mubr.f32.gmra.mxu0 %v1525
    %v1602 = vpop.f32.mrf.mxu0
    %v1603 = vadd.f32 0.0, %v1602
    %v1604 = vpop.f32.mrf.mxu0
    %1605 = vmatprep.mubr.f32.mxu0 0.0
    %1606 = vmatmul.mubr.f32.gmra.mxu0 %v1528
    %v1607 = vpop.f32.mrf.mxu0
    %v1608 = vadd.f32 0.0, %v1607
    %v1609 = vpop.f32.mrf.mxu0
    %1610 = vmatprep.mubr.f32.mxu0 0.0
    %1611 = vmatmul.mubr.f32.gmra.mxu0 %v1531
    %v1612 = vpop.f32.mrf.mxu0
    %v1613 = vadd.f32 0.0, %v1612
    %v1614 = vpop.f32.mrf.mxu0
    %1615 = vmatprep.mubr.f32.mxu0 0.0
    %1616 = vmatmul.mubr.f32.gmra.mxu0 %v1534
    %v1617 = vpop.f32.mrf.mxu0
    %v1618 = vadd.f32 0.0, %v1617
    %v1619 = vpop.f32.mrf.mxu0
    %1620 = vdwg.mxu0
    %v1621 = vlaneseq
    %v1622 = vshrl.u32 %v1621, 7
    %v1623 = vsub.s32 0, %v1622
    %v1624 = vrot.slane %v1164, %v1623
    %1625 = vmatprep.subr.mxu0 0.0
    %1626 = vmatpush1.msra.mxu0 0.0
    %1627 = vmatprep.subr.mxu0 0.0
    %1628 = vmatpush1.msra.mxu0 0.0
    %1629 = vmatprep.subr.mxu0 0.0
    %1630 = vmatpush1.msra.mxu0 0.0
    %1631 = vmatprep.subr.mxu0 0.0
    %1632 = vmatpush1.msra.mxu0 0.0
    %1633 = vmatprep.subr.mxu0 0.0
    %1634 = vmatpush1.msra.mxu0 0.0
    %1635 = vmatprep.subr.mxu0 0.0
    %1636 = vmatpush1.msra.mxu0 0.0
    %1637 = vmatprep.subr.mxu0 0.0
    %1638 = vmatpush1.msra.mxu0 0.0
    %1639 = vmatprep.subr.mxu0 0.0
    %1640 = vmatpush1.msra.mxu0 0.0
    %1641 = vmatprep.subr.mxu0 0.0
    %1642 = vmatpush1.msra.mxu0 0.0
    %1643 = vmatprep.subr.mxu0 0.0
    %1644 = vmatpush1.msra.mxu0 0.0
    %1645 = vmatprep.subr.mxu0 0.0
    %1646 = vmatpush1.msra.mxu0 0.0
    %1647 = vmatprep.subr.mxu0 0.0
    %1648 = vmatpush1.msra.mxu0 0.0
    %1649 = vmatprep.subr.mxu0 0.0
    %1650 = vmatpush1.msra.mxu0 %v1618
    %1651 = vmatprep.subr.mxu0 0.0
    %1652 = vmatpush1.msra.mxu0 %v1613
    %1653 = vmatprep.subr.mxu0 0.0
    %1654 = vmatpush1.msra.mxu0 %v1608
    %1655 = vmatprep.subr.mxu0 0.0
    %1656 = vmatpush1.msra.mxu0 %v1603
    %1657 = vmatprep.subr.mxu0 0.0
    %1658 = vmatpush2.msra.mxu0 0.0
    %1659 = vmatprep.subr.mxu0 0.0
    %1660 = vmatpush2.msra.mxu0 0.0
    %1661 = vmatprep.subr.mxu0 0.0
    %1662 = vmatpush2.msra.mxu0 0.0
    %1663 = vmatprep.subr.mxu0 0.0
    %1664 = vmatpush2.msra.mxu0 0.0
    %1665 = vmatprep.subr.mxu0 0.0
    %1666 = vmatpush2.msra.mxu0 0.0
    %1667 = vmatprep.subr.mxu0 0.0
    %1668 = vmatpush2.msra.mxu0 0.0
    %1669 = vmatprep.subr.mxu0 0.0
    %1670 = vmatpush2.msra.mxu0 0.0
    %1671 = vmatprep.subr.mxu0 0.0
    %1672 = vmatpush2.msra.mxu0 0.0
    %1673 = vmatprep.subr.mxu0 0.0
    %1674 = vmatpush2.msra.mxu0 0.0
    %1675 = vmatprep.subr.mxu0 0.0
    %1676 = vmatpush2.msra.mxu0 0.0
    %1677 = vmatprep.subr.mxu0 0.0
    %1678 = vmatpush2.msra.mxu0 0.0
    %1679 = vmatprep.subr.mxu0 0.0
    %1680 = vmatpush2.msra.mxu0 0.0
    %1681 = vmatprep.subr.mxu0 0.0
    %1682 = vmatpush2.msra.mxu0 0.0
    %1683 = vmatprep.subr.mxu0 0.0
    %1684 = vmatpush2.msra.mxu0 0.0
    %1685 = vmatprep.subr.mxu0 0.0
    %1686 = vmatpush2.msra.mxu0 0.0
    %1687 = vmatprep.subr.mxu0 0.0
    %1688 = vmatpush2.msra.mxu0 0.0
    %1689 = vmatprep.mubr.f32.mxu0 0.0
    %1690 = vmatmul.mubr.f32.gmra.mxu0 %v58
    %v1691 = vpop.f32.mrf.mxu0
    %v1692 = vadd.f32 %v1624, %v1691
    %v1693 = vpop.f32.mrf.mxu0
    %1694 = vmatprep.mubr.f32.mxu0 0.0
    %1695 = vmatmul.mubr.f32.gmra.mxu0 %v61
    %v1696 = vpop.f32.mrf.mxu0
    %v1697 = vadd.f32 %v1624, %v1696
    %v1698 = vpop.f32.mrf.mxu0
    %1699 = vmatprep.mubr.f32.mxu0 0.0
    %1700 = vmatmul.mubr.f32.gmra.mxu0 %v64
    %v1701 = vpop.f32.mrf.mxu0
    %v1702 = vadd.f32 %v1624, %v1701
    %v1703 = vpop.f32.mrf.mxu0
    %1704 = vmatprep.mubr.f32.mxu0 0.0
    %1705 = vmatmul.mubr.f32.gmra.mxu0 %v67
    %v1706 = vpop.f32.mrf.mxu0
    %v1707 = vadd.f32 %v1624, %v1706
    %v1708 = vpop.f32.mrf.mxu0
    %1709 = vdwg.mxu0
    %v1710 = vsel %vm56, %v1692, 0.0
    %1711 = vadd.xlane.f32.xlu0 %v1710
    %v1712 = vpop.xlane.xlu0 %1711
    %v1713 = vsel %vm56, %v1697, 0.0
    %1714 = vadd.xlane.f32.xlu0 %v1713
    %v1715 = vpop.xlane.xlu0 %1714
    %v1716 = vsel %vm56, %v1702, 0.0
    %1717 = vadd.xlane.f32.xlu0 %v1716
    %v1718 = vpop.xlane.xlu0 %1717
    %v1719 = vsel %vm56, %v1707, 0.0
    %1720 = vadd.xlane.f32.xlu0 %v1719
    %v1721 = vpop.xlane.xlu0 %1720
    %v1722 = vmul.f32 %v1712, %v626
    %v1723 = vmul.f32 %v1715, %v626
    %v1724 = vmul.f32 %v1718, %v626
    %v1725 = vmul.f32 %v1721, %v626
    %v1726 = vmul.f32 %v1692, %v1692
    %v1727 = vmul.f32 %v1697, %v1697
    %v1728 = vmul.f32 %v1702, %v1702
    %v1729 = vmul.f32 %v1707, %v1707
    %v1730 = vsel %vm56, %v1726, 0.0
    %1731 = vadd.xlane.f32.xlu0 %v1730
    %v1732 = vpop.xlane.xlu0 %1731
    %v1733 = vsel %vm56, %v1727, 0.0
    %1734 = vadd.xlane.f32.xlu0 %v1733
    %v1735 = vpop.xlane.xlu0 %1734
    %v1736 = vsel %vm56, %v1728, 0.0
    %1737 = vadd.xlane.f32.xlu0 %v1736
    %v1738 = vpop.xlane.xlu0 %1737
    %v1739 = vsel %vm56, %v1729, 0.0
    %1740 = vadd.xlane.f32.xlu0 %v1739
    %v1741 = vpop.xlane.xlu0 %1740
    %v1742 = vmul.f32 %v1732, %v626
    %v1743 = vmul.f32 %v1735, %v626
    %v1744 = vmul.f32 %v1738, %v626
    %v1745 = vmul.f32 %v1741, %v626
    %v1746 = vsub.f32 %v1692, %v1722
    %v1747 = vsub.f32 %v1697, %v1723
    %v1748 = vsub.f32 %v1702, %v1724
    %v1749 = vsub.f32 %v1707, %v1725
    %v1750 = vmul.f32 %v1722, %v1722
    %v1751 = vmul.f32 %v1723, %v1723
    %v1752 = vmul.f32 %v1724, %v1724
    %v1753 = vmul.f32 %v1725, %v1725
    %v1754 = vsub.f32 %v1742, %v1750
    %v1755 = vsub.f32 %v1743, %v1751
    %v1756 = vsub.f32 %v1744, %v1752
    %v1757 = vsub.f32 %v1745, %v1753
    %v1758 = vadd.f32 %v1754, 1e-05
    %v1759 = vadd.f32 %v1755, 1e-05
    %v1760 = vadd.f32 %v1756, 1e-05
    %v1761 = vadd.f32 %v1757, 1e-05
    %v1762 = vrsqrt.pop %v1758
    %v1763 = vrsqrt.pop %v1759
    %v1764 = vrsqrt.pop %v1760
    %v1765 = vrsqrt.pop %v1761
    %v1766 = vmul.f32 %v1746, %v1762
    %v1767 = vmul.f32 %v1747, %v1763
    %v1768 = vmul.f32 %v1748, %v1764
    %v1769 = vmul.f32 %v1749, %v1765
    %v1770 = vlaneseq
    %v1771 = vshrl.u32 %v1770, 7
    %v1772 = vsub.s32 0, %v1771
    %v1773 = vrot.slane %v1165, %v1772
    %v1774 = vmul.f32 %v1766, %v1773
    %v1775 = vmul.f32 %v1767, %v1773
    %v1776 = vmul.f32 %v1768, %v1773
    %v1777 = vmul.f32 %v1769, %v1773
    %v1778 = vlaneseq
    %v1779 = vshrl.u32 %v1778, 7
    %v1780 = vsub.s32 0, %v1779
    %v1781 = vrot.slane %v1166, %v1780
    %v1782 = vadd.f32 %v1774, %v1781
    %v1783 = vadd.f32 %v1775, %v1781
    %v1784 = vadd.f32 %v1776, %v1781
    %v1785 = vadd.f32 %v1777, %v1781
    %v1786 = vadd.f32 %v1782, %v1151
    %v1787 = vadd.f32 %v1783, %v1152
    %v1788 = vadd.f32 %v1784, %v1153
    %v1789 = vadd.f32 %v1785, %v1154
    %1790 = vmatprep.subr.mxu0 0.0
    %1791 = vmatpush1.msra.mxu0 0.0
    %1792 = vmatprep.subr.mxu0 0.0
    %1793 = vmatpush1.msra.mxu0 0.0
    %1794 = vmatprep.subr.mxu0 0.0
    %1795 = vmatpush1.msra.mxu0 0.0
    %1796 = vmatprep.subr.mxu0 0.0
    %1797 = vmatpush1.msra.mxu0 0.0
    %1798 = vmatprep.subr.mxu0 0.0
    %1799 = vmatpush1.msra.mxu0 0.0
    %1800 = vmatprep.subr.mxu0 0.0
    %1801 = vmatpush1.msra.mxu0 0.0
    %1802 = vmatprep.subr.mxu0 0.0
    %1803 = vmatpush1.msra.mxu0 0.0
    %1804 = vmatprep.subr.mxu0 0.0
    %1805 = vmatpush1.msra.mxu0 0.0
    %1806 = vmatprep.subr.mxu0 0.0
    %1807 = vmatpush1.msra.mxu0 0.0
    %1808 = vmatprep.subr.mxu0 0.0
    %1809 = vmatpush1.msra.mxu0 0.0
    %1810 = vmatprep.subr.mxu0 0.0
    %1811 = vmatpush1.msra.mxu0 0.0
    %1812 = vmatprep.subr.mxu0 0.0
    %1813 = vmatpush1.msra.mxu0 0.0
    %1814 = vmatprep.subr.mxu0 0.0
    %1815 = vmatpush1.msra.mxu0 %v1789
    %1816 = vmatprep.subr.mxu0 0.0
    %1817 = vmatpush1.msra.mxu0 %v1788
    %1818 = vmatprep.subr.mxu0 0.0
    %1819 = vmatpush1.msra.mxu0 %v1787
    %1820 = vmatprep.subr.mxu0 0.0
    %1821 = vmatpush1.msra.mxu0 %v1786
    %1822 = vmatprep.subr.mxu0 0.0
    %1823 = vmatpush2.msra.mxu0 0.0
    %1824 = vmatprep.subr.mxu0 0.0
    %1825 = vmatpush2.msra.mxu0 0.0
    %1826 = vmatprep.subr.mxu0 0.0
    %1827 = vmatpush2.msra.mxu0 0.0
    %1828 = vmatprep.subr.mxu0 0.0
    %1829 = vmatpush2.msra.mxu0 0.0
    %1830 = vmatprep.subr.mxu0 0.0
    %1831 = vmatpush2.msra.mxu0 0.0
    %1832 = vmatprep.subr.mxu0 0.0
    %1833 = vmatpush2.msra.mxu0 0.0
    %1834 = vmatprep.subr.mxu0 0.0
    %1835 = vmatpush2.msra.mxu0 0.0
    %1836 = vmatprep.subr.mxu0 0.0
    %1837 = vmatpush2.msra.mxu0 0.0
    %1838 = vmatprep.subr.mxu0 0.0
    %1839 = vmatpush2.msra.mxu0 0.0
    %1840 = vmatprep.subr.mxu0 0.0
    %1841 = vmatpush2.msra.mxu0 0.0
    %1842 = vmatprep.subr.mxu0 0.0
    %1843 = vmatpush2.msra.mxu0 0.0
    %1844 = vmatprep.subr.mxu0 0.0
    %1845 = vmatpush2.msra.mxu0 0.0
    %1846 = vmatprep.subr.mxu0 0.0
    %1847 = vmatpush2.msra.mxu0 0.0
    %1848 = vmatprep.subr.mxu0 0.0
    %1849 = vmatpush2.msra.mxu0 0.0
    %1850 = vmatprep.subr.mxu0 0.0
    %1851 = vmatpush2.msra.mxu0 0.0
    %1852 = vmatprep.subr.mxu0 0.0
    %1853 = vmatpush2.msra.mxu0 0.0
    %1854 = vmatprep.mubr.f32.mxu0 0.0
    %1855 = vmatmul.mubr.f32.gmra.mxu0 %v58
    %v1856 = vpop.f32.mrf.mxu0
    %v1857 = vadd.f32 0.0, %v1856
    %v1858 = vpop.f32.mrf.mxu0
    %1859 = vmatprep.mubr.f32.mxu0 0.0
    %1860 = vmatmul.mubr.f32.gmra.mxu0 %v61
    %v1861 = vpop.f32.mrf.mxu0
    %v1862 = vadd.f32 0.0, %v1861
    %v1863 = vpop.f32.mrf.mxu0
    %1864 = vmatprep.mubr.f32.mxu0 0.0
    %1865 = vmatmul.mubr.f32.gmra.mxu0 %v64
    %v1866 = vpop.f32.mrf.mxu0
    %v1867 = vadd.f32 0.0, %v1866
    %v1868 = vpop.f32.mrf.mxu0
    %1869 = vmatprep.mubr.f32.mxu0 0.0
    %1870 = vmatmul.mubr.f32.gmra.mxu0 %v67
    %v1871 = vpop.f32.mrf.mxu0
    %v1872 = vadd.f32 0.0, %v1871
    %v1873 = vpop.f32.mrf.mxu0
    %1874 = vdwg.mxu0
    %v1875 = vlaneseq
    %v1876 = vshrl.u32 %v1875, 7
    %v1877 = vsub.s32 0, %v1876
    %v1878 = vrot.slane %v1167, %v1877
    %1883 = vrot.lane.b32.xlu0 %v1155, 32
    %v1884 = vpop.permute.xlu0 %1883
    %1885 = vrot.lane.b32.xlu0 %v1156, 32
    %v1886 = vpop.permute.xlu0 %1885
    %1887 = vrot.lane.b32.xlu0 %v1157, 32
    %v1888 = vpop.permute.xlu0 %1887
    %1889 = vrot.lane.b32.xlu0 %v1158, 32
    %v1890 = vpop.permute.xlu0 %1889
    %v1896 = vsel %vm56, %v1857, 0
    %v1899 = vsel %vm56, %v1862, 0
    %v1902 = vsel %vm56, %v1867, 0
    %v1905 = vsel %vm56, %v1872, 0
    %1907 = vmatprep.subr.mxu0 0.0
    %1908 = vmatpush1.msra.mxu0 0.0
    %1909 = vmatprep.subr.mxu0 0.0
    %1910 = vmatpush1.msra.mxu0 0.0
    %1911 = vmatprep.subr.mxu0 0.0
    %1912 = vmatpush1.msra.mxu0 0.0
    %1913 = vmatprep.subr.mxu0 0.0
    %1914 = vmatpush1.msra.mxu0 0.0
    %1915 = vmatprep.subr.mxu0 0.0
    %1916 = vmatpush1.msra.mxu0 0.0
    %1917 = vmatprep.subr.mxu0 0.0
    %1918 = vmatpush1.msra.mxu0 0.0
    %1919 = vmatprep.subr.mxu0 0.0
    %1920 = vmatpush1.msra.mxu0 0.0
    %1921 = vmatprep.subr.mxu0 0.0
    %1922 = vmatpush1.msra.mxu0 0.0
    %1923 = vmatprep.subr.mxu0 0.0
    %1924 = vmatpush1.msra.mxu0 0.0
    %1925 = vmatprep.subr.mxu0 0.0
    %1926 = vmatpush1.msra.mxu0 0.0
    %1927 = vmatprep.subr.mxu0 0.0
    %1928 = vmatpush1.msra.mxu0 0.0
    %1929 = vmatprep.subr.mxu0 0.0
    %1930 = vmatpush1.msra.mxu0 0.0
    %1931 = vmatprep.subr.mxu0 0.0
    %1932 = vmatpush1.msra.mxu0 %v1890
    %1933 = vmatprep.subr.mxu0 0.0
    %1934 = vmatpush1.msra.mxu0 %v1888
    %1935 = vmatprep.subr.mxu0 0.0
    %1936 = vmatpush1.msra.mxu0 %v1886
    %1937 = vmatprep.subr.mxu0 0.0
    %1938 = vmatpush1.msra.mxu0 %v1884
    %1939 = vmatprep.subr.mxu0 0.0
    %1940 = vmatpush2.msra.mxu0 0.0
    %1941 = vmatprep.subr.mxu0 0.0
    %1942 = vmatpush2.msra.mxu0 0.0
    %1943 = vmatprep.subr.mxu0 0.0
    %1944 = vmatpush2.msra.mxu0 0.0
    %1945 = vmatprep.subr.mxu0 0.0
    %1946 = vmatpush2.msra.mxu0 0.0
    %1947 = vmatprep.subr.mxu0 0.0
    %1948 = vmatpush2.msra.mxu0 0.0
    %1949 = vmatprep.subr.mxu0 0.0
    %1950 = vmatpush2.msra.mxu0 0.0
    %1951 = vmatprep.subr.mxu0 0.0
    %1952 = vmatpush2.msra.mxu0 0.0
    %1953 = vmatprep.subr.mxu0 0.0
    %1954 = vmatpush2.msra.mxu0 0.0
    %1955 = vmatprep.subr.mxu0 0.0
    %1956 = vmatpush2.msra.mxu0 0.0
    %1957 = vmatprep.subr.mxu0 0.0
    %1958 = vmatpush2.msra.mxu0 0.0
    %1959 = vmatprep.subr.mxu0 0.0
    %1960 = vmatpush2.msra.mxu0 0.0
    %1961 = vmatprep.subr.mxu0 0.0
    %1962 = vmatpush2.msra.mxu0 0.0
    %1963 = vmatprep.subr.mxu0 0.0
    %1964 = vmatpush2.msra.mxu0 0.0
    %1965 = vmatprep.subr.mxu0 0.0
    %1966 = vmatpush2.msra.mxu0 0.0
    %1967 = vmatprep.subr.mxu0 0.0
    %1968 = vmatpush2.msra.mxu0 0.0
    %1969 = vmatprep.subr.mxu0 0.0
    %1970 = vmatpush2.msra.mxu0 0.0
    %1971 = vmatprep.mubr.f32.mxu0 0.0
    %1972 = vmatmul.mubr.f32.gmra.mxu0 %v1896
    %v1973 = vpop.f32.mrf.mxu0
    %v1974 = vadd.f32 %v1878, %v1973
    %v1975 = vpop.f32.mrf.mxu0
    %1976 = vmatprep.mubr.f32.mxu0 0.0
    %1977 = vmatmul.mubr.f32.gmra.mxu0 %v1899
    %v1978 = vpop.f32.mrf.mxu0
    %v1979 = vadd.f32 %v1878, %v1978
    %v1980 = vpop.f32.mrf.mxu0
    %1981 = vmatprep.mubr.f32.mxu0 0.0
    %1982 = vmatmul.mubr.f32.gmra.mxu0 %v1902
    %v1983 = vpop.f32.mrf.mxu0
    %v1984 = vadd.f32 %v1878, %v1983
    %v1985 = vpop.f32.mrf.mxu0
    %1986 = vmatprep.mubr.f32.mxu0 0.0
    %1987 = vmatmul.mubr.f32.gmra.mxu0 %v1905
    %v1988 = vpop.f32.mrf.mxu0
    %v1989 = vadd.f32 %v1878, %v1988
    %v1990 = vpop.f32.mrf.mxu0
    %1991 = vdwg.mxu0
    %v1992 = vmax.f32 %v1974, 0.0
    %v1993 = vmax.f32 %v1979, 0.0
    %v1994 = vmax.f32 %v1984, 0.0
    %v1995 = vmax.f32 %v1989, 0.0
    %1996 = vmatprep.subr.mxu0 0.0
    %1997 = vmatpush1.msra.mxu0 0.0
    %1998 = vmatprep.subr.mxu0 0.0
    %1999 = vmatpush1.msra.mxu0 0.0
    %2000 = vmatprep.subr.mxu0 0.0
    %2001 = vmatpush1.msra.mxu0 0.0
    %2002 = vmatprep.subr.mxu0 0.0
    %2003 = vmatpush1.msra.mxu0 0.0
    %2004 = vmatprep.subr.mxu0 0.0
    %2005 = vmatpush1.msra.mxu0 0.0
    %2006 = vmatprep.subr.mxu0 0.0
    %2007 = vmatpush1.msra.mxu0 0.0
    %2008 = vmatprep.subr.mxu0 0.0
    %2009 = vmatpush1.msra.mxu0 0.0
    %2010 = vmatprep.subr.mxu0 0.0
    %2011 = vmatpush1.msra.mxu0 0.0
    %2012 = vmatprep.subr.mxu0 0.0
    %2013 = vmatpush1.msra.mxu0 0.0
    %2014 = vmatprep.subr.mxu0 0.0
    %2015 = vmatpush1.msra.mxu0 0.0
    %2016 = vmatprep.subr.mxu0 0.0
    %2017 = vmatpush1.msra.mxu0 0.0
    %2018 = vmatprep.subr.mxu0 0.0
    %2019 = vmatpush1.msra.mxu0 0.0
    %2020 = vmatprep.subr.mxu0 0.0
    %2021 = vmatpush1.msra.mxu0 %v1995
    %2022 = vmatprep.subr.mxu0 0.0
    %2023 = vmatpush1.msra.mxu0 %v1994
    %2024 = vmatprep.subr.mxu0 0.0
    %2025 = vmatpush1.msra.mxu0 %v1993
    %2026 = vmatprep.subr.mxu0 0.0
    %2027 = vmatpush1.msra.mxu0 %v1992
    %2028 = vmatprep.subr.mxu0 0.0
    %2029 = vmatpush2.msra.mxu0 0.0
    %2030 = vmatprep.subr.mxu0 0.0
    %2031 = vmatpush2.msra.mxu0 0.0
    %2032 = vmatprep.subr.mxu0 0.0
    %2033 = vmatpush2.msra.mxu0 0.0
    %2034 = vmatprep.subr.mxu0 0.0
    %2035 = vmatpush2.msra.mxu0 0.0
    %2036 = vmatprep.subr.mxu0 0.0
    %2037 = vmatpush2.msra.mxu0 0.0
    %2038 = vmatprep.subr.mxu0 0.0
    %2039 = vmatpush2.msra.mxu0 0.0
    %2040 = vmatprep.subr.mxu0 0.0
    %2041 = vmatpush2.msra.mxu0 0.0
    %2042 = vmatprep.subr.mxu0 0.0
    %2043 = vmatpush2.msra.mxu0 0.0
    %2044 = vmatprep.subr.mxu0 0.0
    %2045 = vmatpush2.msra.mxu0 0.0
    %2046 = vmatprep.subr.mxu0 0.0
    %2047 = vmatpush2.msra.mxu0 0.0
    %2048 = vmatprep.subr.mxu0 0.0
    %2049 = vmatpush2.msra.mxu0 0.0
    %2050 = vmatprep.subr.mxu0 0.0
    %2051 = vmatpush2.msra.mxu0 0.0
    %2052 = vmatprep.subr.mxu0 0.0
    %2053 = vmatpush2.msra.mxu0 0.0
    %2054 = vmatprep.subr.mxu0 0.0
    %2055 = vmatpush2.msra.mxu0 0.0
    %2056 = vmatprep.subr.mxu0 0.0
    %2057 = vmatpush2.msra.mxu0 0.0
    %2058 = vmatprep.subr.mxu0 0.0
    %2059 = vmatpush2.msra.mxu0 0.0
    %2060 = vmatprep.mubr.f32.mxu0 0.0
    %2061 = vmatmul.mubr.f32.gmra.mxu0 %v58
    %v2062 = vpop.f32.mrf.mxu0
    %v2063 = vadd.f32 0.0, %v2062
    %v2064 = vpop.f32.mrf.mxu0
    %2065 = vmatprep.mubr.f32.mxu0 0.0
    %2066 = vmatmul.mubr.f32.gmra.mxu0 %v61
    %v2067 = vpop.f32.mrf.mxu0
    %v2068 = vadd.f32 0.0, %v2067
    %v2069 = vpop.f32.mrf.mxu0
    %2070 = vmatprep.mubr.f32.mxu0 0.0
    %2071 = vmatmul.mubr.f32.gmra.mxu0 %v64
    %v2072 = vpop.f32.mrf.mxu0
    %v2073 = vadd.f32 0.0, %v2072
    %v2074 = vpop.f32.mrf.mxu0
    %2075 = vmatprep.mubr.f32.mxu0 0.0
    %2076 = vmatmul.mubr.f32.gmra.mxu0 %v67
    %v2077 = vpop.f32.mrf.mxu0
    %v2078 = vadd.f32 0.0, %v2077
    %v2079 = vpop.f32.mrf.mxu0
    %2080 = vdwg.mxu0
    %v2081 = vlaneseq
    %v2082 = vshrl.u32 %v2081, 7
    %v2083 = vsub.s32 0, %v2082
    %v2084 = vrot.slane %v1168, %v2083
    %v2086 = vsel %vm56, %v2063, 0
    %v2089 = vsel %vm56, %v2068, 0
    %v2092 = vsel %vm56, %v2073, 0
    %v2095 = vsel %vm56, %v2078, 0
    %2097 = vmatprep.subr.mxu0 0.0
    %2098 = vmatpush1.msra.mxu0 0.0
    %2099 = vmatprep.subr.mxu0 0.0
    %2100 = vmatpush1.msra.mxu0 0.0
    %2101 = vmatprep.subr.mxu0 0.0
    %2102 = vmatpush1.msra.mxu0 0.0
    %2103 = vmatprep.subr.mxu0 0.0
    %2104 = vmatpush1.msra.mxu0 0.0
    %2105 = vmatprep.subr.mxu0 0.0
    %2106 = vmatpush1.msra.mxu0 0.0
    %2107 = vmatprep.subr.mxu0 0.0
    %2108 = vmatpush1.msra.mxu0 0.0
    %2109 = vmatprep.subr.mxu0 0.0
    %2110 = vmatpush1.msra.mxu0 0.0
    %2111 = vmatprep.subr.mxu0 0.0
    %2112 = vmatpush1.msra.mxu0 0.0
    %2113 = vmatprep.subr.mxu0 0.0
    %2114 = vmatpush1.msra.mxu0 0.0
    %2115 = vmatprep.subr.mxu0 0.0
    %2116 = vmatpush1.msra.mxu0 0.0
    %2117 = vmatprep.subr.mxu0 0.0
    %2118 = vmatpush1.msra.mxu0 0.0
    %2119 = vmatprep.subr.mxu0 0.0
    %2120 = vmatpush1.msra.mxu0 0.0
    %2121 = vmatprep.subr.mxu0 0.0
    %2122 = vmatpush1.msra.mxu0 %v1162
    %2123 = vmatprep.subr.mxu0 0.0
    %2124 = vmatpush1.msra.mxu0 %v1161
    %2125 = vmatprep.subr.mxu0 0.0
    %2126 = vmatpush1.msra.mxu0 %v1160
    %2127 = vmatprep.subr.mxu0 0.0
    %2128 = vmatpush1.msra.mxu0 %v1159
    %2129 = vmatprep.subr.mxu0 0.0
    %2130 = vmatpush2.msra.mxu0 0.0
    %2131 = vmatprep.subr.mxu0 0.0
    %2132 = vmatpush2.msra.mxu0 0.0
    %2133 = vmatprep.subr.mxu0 0.0
    %2134 = vmatpush2.msra.mxu0 0.0
    %2135 = vmatprep.subr.mxu0 0.0
    %2136 = vmatpush2.msra.mxu0 0.0
    %2137 = vmatprep.subr.mxu0 0.0
    %2138 = vmatpush2.msra.mxu0 0.0
    %2139 = vmatprep.subr.mxu0 0.0
    %2140 = vmatpush2.msra.mxu0 0.0
    %2141 = vmatprep.subr.mxu0 0.0
    %2142 = vmatpush2.msra.mxu0 0.0
    %2143 = vmatprep.subr.mxu0 0.0
    %2144 = vmatpush2.msra.mxu0 0.0
    %2145 = vmatprep.subr.mxu0 0.0
    %2146 = vmatpush2.msra.mxu0 0.0
    %2147 = vmatprep.subr.mxu0 0.0
    %2148 = vmatpush2.msra.mxu0 0.0
    %2149 = vmatprep.subr.mxu0 0.0
    %2150 = vmatpush2.msra.mxu0 0.0
    %2151 = vmatprep.subr.mxu0 0.0
    %2152 = vmatpush2.msra.mxu0 0.0
    %2153 = vmatprep.subr.mxu0 0.0
    %2154 = vmatpush2.msra.mxu0 0.0
    %2155 = vmatprep.subr.mxu0 0.0
    %2156 = vmatpush2.msra.mxu0 0.0
    %2157 = vmatprep.subr.mxu0 0.0
    %2158 = vmatpush2.msra.mxu0 0.0
    %2159 = vmatprep.subr.mxu0 0.0
    %2160 = vmatpush2.msra.mxu0 0.0
    %2161 = vmatprep.mubr.f32.mxu0 0.0
    %2162 = vmatmul.mubr.f32.gmra.mxu0 %v2086
    %v2163 = vpop.f32.mrf.mxu0
    %v2164 = vadd.f32 %v2084, %v2163
    %v2165 = vpop.f32.mrf.mxu0
    %2166 = vmatprep.mubr.f32.mxu0 0.0
    %2167 = vmatmul.mubr.f32.gmra.mxu0 %v2089
    %v2168 = vpop.f32.mrf.mxu0
    %v2169 = vadd.f32 %v2084, %v2168
    %v2170 = vpop.f32.mrf.mxu0
    %2171 = vmatprep.mubr.f32.mxu0 0.0
    %2172 = vmatmul.mubr.f32.gmra.mxu0 %v2092
    %v2173 = vpop.f32.mrf.mxu0
    %v2174 = vadd.f32 %v2084, %v2173
    %v2175 = vpop.f32.mrf.mxu0
    %2176 = vmatprep.mubr.f32.mxu0 0.0
    %2177 = vmatmul.mubr.f32.gmra.mxu0 %v2095
    %v2178 = vpop.f32.mrf.mxu0
    %v2179 = vadd.f32 %v2084, %v2178
    %v2180 = vpop.f32.mrf.mxu0
    %2181 = vdwg.mxu0
    %v2182 = vsel %vm56, %v2164, 0.0
    %2183 = vadd.xlane.f32.xlu0 %v2182
    %v2184 = vpop.xlane.xlu0 %2183
    %v2185 = vsel %vm56, %v2169, 0.0
    %2186 = vadd.xlane.f32.xlu0 %v2185
    %v2187 = vpop.xlane.xlu0 %2186
    %v2188 = vsel %vm56, %v2174, 0.0
    %2189 = vadd.xlane.f32.xlu0 %v2188
    %v2190 = vpop.xlane.xlu0 %2189
    %v2191 = vsel %vm56, %v2179, 0.0
    %2192 = vadd.xlane.f32.xlu0 %v2191
    %v2193 = vpop.xlane.xlu0 %2192
    %v2194 = vmul.f32 %v2184, %v626
    %v2195 = vmul.f32 %v2187, %v626
    %v2196 = vmul.f32 %v2190, %v626
    %v2197 = vmul.f32 %v2193, %v626
    %v2198 = vmul.f32 %v2164, %v2164
    %v2199 = vmul.f32 %v2169, %v2169
    %v2200 = vmul.f32 %v2174, %v2174
    %v2201 = vmul.f32 %v2179, %v2179
    %v2202 = vsel %vm56, %v2198, 0.0
    %2203 = vadd.xlane.f32.xlu0 %v2202
    %v2204 = vpop.xlane.xlu0 %2203
    %v2205 = vsel %vm56, %v2199, 0.0
    %2206 = vadd.xlane.f32.xlu0 %v2205
    %v2207 = vpop.xlane.xlu0 %2206
    %v2208 = vsel %vm56, %v2200, 0.0
    %2209 = vadd.xlane.f32.xlu0 %v2208
    %v2210 = vpop.xlane.xlu0 %2209
    %v2211 = vsel %vm56, %v2201, 0.0
    %2212 = vadd.xlane.f32.xlu0 %v2211
    %v2213 = vpop.xlane.xlu0 %2212
    %v2214 = vmul.f32 %v2204, %v626
    %v2215 = vmul.f32 %v2207, %v626
    %v2216 = vmul.f32 %v2210, %v626
    %v2217 = vmul.f32 %v2213, %v626
    %v2218 = vsub.f32 %v2164, %v2194
    %v2219 = vsub.f32 %v2169, %v2195
    %v2220 = vsub.f32 %v2174, %v2196
    %v2221 = vsub.f32 %v2179, %v2197
    %v2222 = vmul.f32 %v2194, %v2194
    %v2223 = vmul.f32 %v2195, %v2195
    %v2224 = vmul.f32 %v2196, %v2196
    %v2225 = vmul.f32 %v2197, %v2197
    %v2226 = vsub.f32 %v2214, %v2222
    %v2227 = vsub.f32 %v2215, %v2223
    %v2228 = vsub.f32 %v2216, %v2224
    %v2229 = vsub.f32 %v2217, %v2225
    %v2230 = vadd.f32 %v2226, 1e-05
    %v2231 = vadd.f32 %v2227, 1e-05
    %v2232 = vadd.f32 %v2228, 1e-05
    %v2233 = vadd.f32 %v2229, 1e-05
    %v2234 = vrsqrt.pop %v2230
    %v2235 = vrsqrt.pop %v2231
    %v2236 = vrsqrt.pop %v2232
    %v2237 = vrsqrt.pop %v2233
    %v2238 = vmul.f32 %v2218, %v2234
    %v2239 = vmul.f32 %v2219, %v2235
    %v2240 = vmul.f32 %v2220, %v2236
    %v2241 = vmul.f32 %v2221, %v2237
    %v2242 = vmul.f32 %v2238, %v1773
    %v2243 = vmul.f32 %v2239, %v1773
    %v2244 = vmul.f32 %v2240, %v1773
    %v2245 = vmul.f32 %v2241, %v1773
    %v2246 = vadd.f32 %v2242, %v1781
    %v2247 = vadd.f32 %v2243, %v1781
    %v2248 = vadd.f32 %v2244, %v1781
    %v2249 = vadd.f32 %v2245, %v1781
    %v2250 = vld [vmem:[%s2] sm:$0xf]
    %v2252 = vsel %vm56, %v2250, 0
    %2254 = vmatprep.subr.mxu0 0.0
    %2255 = vmatpush1.msra.mxu0 0.0
    %2256 = vmatprep.subr.mxu0 0.0
    %2257 = vmatpush1.msra.mxu0 0.0
    %2258 = vmatprep.subr.mxu0 0.0
    %2259 = vmatpush1.msra.mxu0 0.0
    %2260 = vmatprep.subr.mxu0 0.0
    %2261 = vmatpush1.msra.mxu0 0.0
    %2262 = vmatprep.subr.mxu0 0.0
    %2263 = vmatpush1.msra.mxu0 0.0
    %2264 = vmatprep.subr.mxu0 0.0
    %2265 = vmatpush1.msra.mxu0 0.0
    %2266 = vmatprep.subr.mxu0 0.0
    %2267 = vmatpush1.msra.mxu0 0.0
    %2268 = vmatprep.subr.mxu0 0.0
    %2269 = vmatpush1.msra.mxu0 0.0
    %2270 = vmatprep.subr.mxu0 0.0
    %2271 = vmatpush1.msra.mxu0 0.0
    %2272 = vmatprep.subr.mxu0 0.0
    %2273 = vmatpush1.msra.mxu0 0.0
    %2274 = vmatprep.subr.mxu0 0.0
    %2275 = vmatpush1.msra.mxu0 0.0
    %2276 = vmatprep.subr.mxu0 0.0
    %2277 = vmatpush1.msra.mxu0 0.0
    %2278 = vmatprep.subr.mxu0 0.0
    %2279 = vmatpush1.msra.mxu0 %v2249
    %2280 = vmatprep.subr.mxu0 0.0
    %2281 = vmatpush1.msra.mxu0 %v2248
    %2282 = vmatprep.subr.mxu0 0.0
    %2283 = vmatpush1.msra.mxu0 %v2247
    %2284 = vmatprep.subr.mxu0 0.0
    %2285 = vmatpush1.msra.mxu0 %v2246
    %2286 = vmatprep.subr.mxu0 0.0
    %2287 = vmatpush2.msra.mxu0 0.0
    %2288 = vmatprep.subr.mxu0 0.0
    %2289 = vmatpush2.msra.mxu0 0.0
    %2290 = vmatprep.subr.mxu0 0.0
    %2291 = vmatpush2.msra.mxu0 0.0
    %2292 = vmatprep.subr.mxu0 0.0
    %2293 = vmatpush2.msra.mxu0 0.0
    %2294 = vmatprep.subr.mxu0 0.0
    %2295 = vmatpush2.msra.mxu0 0.0
    %2296 = vmatprep.subr.mxu0 0.0
    %2297 = vmatpush2.msra.mxu0 0.0
    %2298 = vmatprep.subr.mxu0 0.0
    %2299 = vmatpush2.msra.mxu0 0.0
    %2300 = vmatprep.subr.mxu0 0.0
    %2301 = vmatpush2.msra.mxu0 0.0
    %2302 = vmatprep.subr.mxu0 0.0
    %2303 = vmatpush2.msra.mxu0 0.0
    %2304 = vmatprep.subr.mxu0 0.0
    %2305 = vmatpush2.msra.mxu0 0.0
    %2306 = vmatprep.subr.mxu0 0.0
    %2307 = vmatpush2.msra.mxu0 0.0
    %2308 = vmatprep.subr.mxu0 0.0
    %2309 = vmatpush2.msra.mxu0 0.0
    %2310 = vmatprep.subr.mxu0 0.0
    %2311 = vmatpush2.msra.mxu0 0.0
    %2312 = vmatprep.subr.mxu0 0.0
    %2313 = vmatpush2.msra.mxu0 0.0
    %2314 = vmatprep.subr.mxu0 0.0
    %2315 = vmatpush2.msra.mxu0 0.0
    %2316 = vmatprep.subr.mxu0 0.0
    %2317 = vmatpush2.msra.mxu0 0.0
    %2318 = vmatprep.mubr.f32.mxu0 0.0
    %2319 = vmatmul.mubr.f32.gmra.mxu0 %v2252
    %v2320 = vpop.f32.mrf.mxu0
    %v2321 = vadd.f32 0.0, %v2320
    %v2322 = vpop.f32.mrf.mxu0
    %2323 = vdwg.mxu0
    %v2325 = vrot.slane %v2321, 2
    %v2327 = vsub.f32 %v2321, %v2325
    %v2328 = vand.u32 2147483647, %v2327
    %v2329 = vld [vmem:[%s4 + $0x10] sm:$0xff]
    %v2330 = vld [vmem:[%s4 + $0x28] sm:$0xff]
    %v2331 = vld [vmem:[%s4 + $0x40] sm:$0xff]
    %v2332 = vld [vmem:[%s4 + $0x58] sm:$0xff]
    %v2333 = vld [vmem:[%s7 + $0xc] sm:$0x1]
    %v2334 = vld [vmem:[%s7 + $0xd] sm:$0x1]
    %v2335 = vlaneseq
    %v2336 = vshrl.u32 %v2335, 7
    %v2337 = vsub.s32 0, %v2336
    %v2338 = vrot.slane %v2333, %v2337
    %v2340 = vsel %vm56, %v2328, 0
    %2342 = vmatprep.subr.mxu0 0.0
    %2343 = vmatpush1.msra.mxu0 0.0
    %2344 = vmatprep.subr.mxu0 0.0
    %2345 = vmatpush1.msra.mxu0 0.0
    %2346 = vmatprep.subr.mxu0 0.0
    %2347 = vmatpush1.msra.mxu0 0.0
    %2348 = vmatprep.subr.mxu0 0.0
    %2349 = vmatpush1.msra.mxu0 0.0
    %2350 = vmatprep.subr.mxu0 0.0
    %2351 = vmatpush1.msra.mxu0 0.0
    %2352 = vmatprep.subr.mxu0 0.0
    %2353 = vmatpush1.msra.mxu0 0.0
    %2354 = vmatprep.subr.mxu0 0.0
    %2355 = vmatpush1.msra.mxu0 0.0
    %2356 = vmatprep.subr.mxu0 0.0
    %2357 = vmatpush1.msra.mxu0 0.0
    %2358 = vmatprep.subr.mxu0 0.0
    %2359 = vmatpush1.msra.mxu0 0.0
    %2360 = vmatprep.subr.mxu0 0.0
    %2361 = vmatpush1.msra.mxu0 0.0
    %2362 = vmatprep.subr.mxu0 0.0
    %2363 = vmatpush1.msra.mxu0 0.0
    %2364 = vmatprep.subr.mxu0 0.0
    %2365 = vmatpush1.msra.mxu0 0.0
    %2366 = vmatprep.subr.mxu0 0.0
    %2367 = vmatpush1.msra.mxu0 %v2332
    %2368 = vmatprep.subr.mxu0 0.0
    %2369 = vmatpush1.msra.mxu0 %v2331
    %2370 = vmatprep.subr.mxu0 0.0
    %2371 = vmatpush1.msra.mxu0 %v2330
    %2372 = vmatprep.subr.mxu0 0.0
    %2373 = vmatpush1.msra.mxu0 %v2329
    %2374 = vmatprep.subr.mxu0 0.0
    %2375 = vmatpush2.msra.mxu0 0.0
    %2376 = vmatprep.subr.mxu0 0.0
    %2377 = vmatpush2.msra.mxu0 0.0
    %2378 = vmatprep.subr.mxu0 0.0
    %2379 = vmatpush2.msra.mxu0 0.0
    %2380 = vmatprep.subr.mxu0 0.0
    %2381 = vmatpush2.msra.mxu0 0.0
    %2382 = vmatprep.subr.mxu0 0.0
    %2383 = vmatpush2.msra.mxu0 0.0
    %2384 = vmatprep.subr.mxu0 0.0
    %2385 = vmatpush2.msra.mxu0 0.0
    %2386 = vmatprep.subr.mxu0 0.0
    %2387 = vmatpush2.msra.mxu0 0.0
    %2388 = vmatprep.subr.mxu0 0.0
    %2389 = vmatpush2.msra.mxu0 0.0
    %2390 = vmatprep.subr.mxu0 0.0
    %2391 = vmatpush2.msra.mxu0 0.0
    %2392 = vmatprep.subr.mxu0 0.0
    %2393 = vmatpush2.msra.mxu0 0.0
    %2394 = vmatprep.subr.mxu0 0.0
    %2395 = vmatpush2.msra.mxu0 0.0
    %2396 = vmatprep.subr.mxu0 0.0
    %2397 = vmatpush2.msra.mxu0 0.0
    %2398 = vmatprep.subr.mxu0 0.0
    %2399 = vmatpush2.msra.mxu0 0.0
    %2400 = vmatprep.subr.mxu0 0.0
    %2401 = vmatpush2.msra.mxu0 0.0
    %2402 = vmatprep.subr.mxu0 0.0
    %2403 = vmatpush2.msra.mxu0 0.0
    %2404 = vmatprep.subr.mxu0 0.0
    %2405 = vmatpush2.msra.mxu0 0.0
    %2406 = vmatprep.mubr.f32.mxu0 0.0
    %2407 = vmatmul.mubr.f32.gmra.mxu0 %v2340
    %v2408 = vpop.f32.mrf.mxu0
    %v2409 = vadd.f32 %v2338, %v2408
    %v2410 = vpop.f32.mrf.mxu0
    %2411 = vdwg.mxu0
    %v2412 = vmax.f32 %v2409, 0.0
    %v2413 = vld [vmem:[%s6] sm:$0xff]
    %v2414 = vld [vmem:[%s6 + $0x8] sm:$0xff]
    %v2415 = vld [vmem:[%s6 + $0x10] sm:$0xff]
    %v2416 = vld [vmem:[%s6 + $0x18] sm:$0xff]
    %v2417 = vld [vmem:[%s6 + $0x20] sm:$0xff]
    %v2418 = vld [vmem:[%s6 + $0x28] sm:$0xff]
    %v2419 = vld [vmem:[%s6 + $0x30] sm:$0xff]
    %v2420 = vld [vmem:[%s6 + $0x38] sm:$0xff]
    %v2421 = vld [vmem:[%s6 + $0x40] sm:$0xff]
    %v2422 = vld [vmem:[%s6 + $0x48] sm:$0xff]
    %v2423 = vld [vmem:[%s6 + $0x50] sm:$0xff]
    %v2424 = vld [vmem:[%s6 + $0x58] sm:$0xff]
    %v2425 = vld [vmem:[%s6 + $0x60] sm:$0xff]
    %v2426 = vld [vmem:[%s6 + $0x68] sm:$0xff]
    %v2427 = vld [vmem:[%s6 + $0x70] sm:$0xff]
    %v2428 = vld [vmem:[%s6 + $0x78] sm:$0xff]
    %v2429 = vlaneseq
    %v2430 = vshrl.u32 %v2429, 7
    %v2431 = vsub.s32 0, %v2430
    %v2432 = vrot.slane %v2334, %v2431
    %2433 = vmatprep.subr.mxu0 0.0
    %2434 = vmatpush1.msra.mxu0 %v2428
    %2435 = vmatprep.subr.mxu0 0.0
    %2436 = vmatpush1.msra.mxu0 %v2427
    %2437 = vmatprep.subr.mxu0 0.0
    %2438 = vmatpush1.msra.mxu0 %v2426
    %2439 = vmatprep.subr.mxu0 0.0
    %2440 = vmatpush1.msra.mxu0 %v2425
    %2441 = vmatprep.subr.mxu0 0.0
    %2442 = vmatpush1.msra.mxu0 %v2424
    %2443 = vmatprep.subr.mxu0 0.0
    %2444 = vmatpush1.msra.mxu0 %v2423
    %2445 = vmatprep.subr.mxu0 0.0
    %2446 = vmatpush1.msra.mxu0 %v2422
    %2447 = vmatprep.subr.mxu0 0.0
    %2448 = vmatpush1.msra.mxu0 %v2421
    %2449 = vmatprep.subr.mxu0 0.0
    %2450 = vmatpush1.msra.mxu0 %v2420
    %2451 = vmatprep.subr.mxu0 0.0
    %2452 = vmatpush1.msra.mxu0 %v2419
    %2453 = vmatprep.subr.mxu0 0.0
    %2454 = vmatpush1.msra.mxu0 %v2418
    %2455 = vmatprep.subr.mxu0 0.0
    %2456 = vmatpush1.msra.mxu0 %v2417
    %2457 = vmatprep.subr.mxu0 0.0
    %2458 = vmatpush1.msra.mxu0 %v2416
    %2459 = vmatprep.subr.mxu0 0.0
    %2460 = vmatpush1.msra.mxu0 %v2415
    %2461 = vmatprep.subr.mxu0 0.0
    %2462 = vmatpush1.msra.mxu0 %v2414
    %2463 = vmatprep.subr.mxu0 0.0
    %2464 = vmatpush1.msra.mxu0 %v2413
    %2465 = vmatprep.subr.mxu0 0.0
    %2466 = vmatpush2.msra.mxu0 0.0
    %2467 = vmatprep.subr.mxu0 0.0
    %2468 = vmatpush2.msra.mxu0 0.0
    %2469 = vmatprep.subr.mxu0 0.0
    %2470 = vmatpush2.msra.mxu0 0.0
    %2471 = vmatprep.subr.mxu0 0.0
    %2472 = vmatpush2.msra.mxu0 0.0
    %2473 = vmatprep.subr.mxu0 0.0
    %2474 = vmatpush2.msra.mxu0 0.0
    %2475 = vmatprep.subr.mxu0 0.0
    %2476 = vmatpush2.msra.mxu0 0.0
    %2477 = vmatprep.subr.mxu0 0.0
    %2478 = vmatpush2.msra.mxu0 0.0
    %2479 = vmatprep.subr.mxu0 0.0
    %2480 = vmatpush2.msra.mxu0 0.0
    %2481 = vmatprep.subr.mxu0 0.0
    %2482 = vmatpush2.msra.mxu0 0.0
    %2483 = vmatprep.subr.mxu0 0.0
    %2484 = vmatpush2.msra.mxu0 0.0
    %2485 = vmatprep.subr.mxu0 0.0
    %2486 = vmatpush2.msra.mxu0 0.0
    %2487 = vmatprep.subr.mxu0 0.0
    %2488 = vmatpush2.msra.mxu0 0.0
    %2489 = vmatprep.subr.mxu0 0.0
    %2490 = vmatpush2.msra.mxu0 0.0
    %2491 = vmatprep.subr.mxu0 0.0
    %2492 = vmatpush2.msra.mxu0 0.0
    %2493 = vmatprep.subr.mxu0 0.0
    %2494 = vmatpush2.msra.mxu0 0.0
    %2495 = vmatprep.subr.mxu0 0.0
    %2496 = vmatpush2.msra.mxu0 0.0
    %2497 = vmatprep.mubr.f32.mxu0 0.0
    %2498 = vmatmul.mubr.f32.gmra.mxu0 %v2412
    %v2499 = vpop.f32.mrf.mxu0
    %v2500 = vadd.f32 %v2432, %v2499
    %v2501 = vpop.f32.mrf.mxu0
    %2502 = vdwg.mxu0
    %v2503 = vxor.u32 %v2500, 2147483648
    %v2504 = vmul.f32 %v2503, 1.442695
    %v2505 = vpow.pop %v2504
    %v2506 = vadd.f32 %v2505, 1.0
    %v2507 = vrcp.pop %v2506
    %v2508 = vmul.f32 1.0, %v2507
    %vm2509 = vcmask 25600
    %2510 = vst.msk [vmem:[#allocation2] sm:$0x3] %vm2509, %v2508
    // Predicated region
    $region34: #{tpu_custom_call.1} parent=1 // pred_check
      _
    $region35: #{tpu_custom_call.1} parent=1 // pred_check_branch
      %2512 = sbr.rel (0) target = $region37
    $region36: #{tpu_custom_call.1} parent=1 // pred_region
      %s2514 = ssub.s32 32, 32
      %2515 = vsyncadd [#allocation3], %s2514
      %s2517 = sshll.u32 [#allocation2], 4
      %s2518 = int_to_ptr.vmem [resolvable:$true] %s2517
      %2520 = dma.vmem_to_hbm [thread:$0]  %s2518, 32, %s8, [#allocation3]
    $region37: #{tpu_custom_call.1} parent=1 // pred_fallthru
      _
    // Predicated region
    $region38: #{tpu_custom_call.1} parent=1 // pred_check
      _
    $region39: #{tpu_custom_call.1} parent=1 // pred_check_branch
      %2522 = sbr.rel (0) target = $region41
    $region40: #{tpu_custom_call.1} parent=1 // pred_region
      %2523 = dma.done [#allocation3], 32
    $region41: #{tpu_custom_call.1} parent=1 // pred_fallthru
      _
    %2524 = vsyncpa [#allocation3], 1

</llo_original>
